<compile_context>
chip_gen: v7x
topology: tpu7x:2x2x1
jax: 0.10.0
libtpu: 0.0.40
codegen_flags: <defaults>
</compile_context>

<pallas_src>
from functools import partial

import jax
import jax.numpy as jnp
from jax.experimental import pallas as pl
from jax.experimental.pallas import tpu as pltpu


D_H1 = 256          # hidden 1
D_H2 = 128          # hidden 2
OUT_PAD = 128       # lane-dense padded output width (true latent_dim = 6)
MAX_TILE_M = 1024   # ~13 MiB VMEM incl. double buffers; fits all of v5e/v6e/v7x


def _round_up(x, m):
    return (x + m - 1) // m * m


def _choose_tile_m(m):
    """Tile the M axis.

    Multiple of 16 (bf16 sublane packing), capped at MAX_TILE_M, and an even
    number of >= 2 tiles whenever M > 16 so the "parallel" grid axis splits
    evenly across v7x's two TensorCores and pipelining is active.
    """
    if m <= 16:
        return 16
    n_tiles = max(2, pl.cdiv(m, MAX_TILE_M))
    if n_tiles % 2:
        n_tiles += 1
    return min(MAX_TILE_M, _round_up(pl.cdiv(m, n_tiles), 16))


def _mlp3_kernel(x_ref, w1_ref, b1_ref, w2_ref, b2_ref, w3_ref, b3_ref, o_ref):
    """Fused 3-layer MLP: relu(relu(x@W1+b1)@W2+b2)@W3+b3 (bf16 MXU, f32 acc)."""
    x = x_ref[...]                                                   # bf16
    h1 = jnp.dot(x, w1_ref[...], preferred_element_type=jnp.float32) + b1_ref[...]
    h1 = jnp.maximum(h1, 0.0).astype(jnp.bfloat16)
    h2 = jnp.dot(h1, w2_ref[...], preferred_element_type=jnp.float32) + b2_ref[...]
    h2 = jnp.maximum(h2, 0.0).astype(jnp.bfloat16)
    o_ref[...] = (
        jnp.dot(h2, w3_ref[...], preferred_element_type=jnp.float32) + b3_ref[...]
    )


def mlp3_pallas(x_flat_bf16, w1, b1, w2, b2, w3, b3):
    """x_flat_bf16: (M, D_in) bf16. Returns (M, OUT_PAD) f32."""
    m, d_in = x_flat_bf16.shape
    tile_m = _choose_tile_m(m)
    grid = (pl.cdiv(m, tile_m),)   # partial last block instead of jnp.pad

    cost = pl.CostEstimate(
        flops=2 * m * (d_in * D_H1 + D_H1 * D_H2 + D_H2 * OUT_PAD),
        bytes_accessed=(
            m * d_in * 2                                             # x (bf16)
            + (d_in * D_H1 + D_H1 * D_H2 + D_H2 * OUT_PAD) * 2       # weights
            + (D_H1 + D_H2 + OUT_PAD) * 4                            # biases
            + m * OUT_PAD * 4                                        # output
        ),
        transcendentals=0,
    )

    return pl.pallas_call(
        _mlp3_kernel,
        out_shape=jax.ShapeDtypeStruct((m, OUT_PAD), jnp.float32),
        grid=grid,
        in_specs=[
            pl.BlockSpec((tile_m, d_in), lambda i: (i, 0)),   # x: streamed per tile
            pl.BlockSpec((d_in, D_H1), lambda i: (0, 0)),     # weights: VMEM-resident
            pl.BlockSpec((1, D_H1), lambda i: (0, 0)),
            pl.BlockSpec((D_H1, D_H2), lambda i: (0, 0)),
            pl.BlockSpec((1, D_H2), lambda i: (0, 0)),
            pl.BlockSpec((D_H2, OUT_PAD), lambda i: (0, 0)),
            pl.BlockSpec((1, OUT_PAD), lambda i: (0, 0)),
        ],
        out_specs=pl.BlockSpec((tile_m, OUT_PAD), lambda i: (i, 0)),
        compiler_params=pltpu.CompilerParams(
            dimension_semantics=("parallel",),        # shards M tiles over v7x's 2 TCs
            vmem_limit_bytes=32 * 1024 * 1024,        # > v5e's 16 MiB default scoped limit
        ),
        cost_estimate=cost,
    )(x_flat_bf16, w1, b1, w2, b2, w3, b3)


@partial(jax.jit, static_argnames=("img_concept_size", "latent_dim"))
def _triple_mlp_forward(x, w1, b1, w2, b2, w3, b3, *, img_concept_size, latent_dim):
    """Whole forward under one jit so the wrapper copies fuse with the kernel."""
    b, c, h = x.shape[0], x.shape[1], x.shape[2]
    s = img_concept_size
    # (B,C,H,3,S) -> (3,B,C,H,S) -> (3B, C*H*S). Row j*B+b is slice j of batch
    # element b, flattened exactly like torch.nn.Flatten on NCHW.
    x_stacked = (
        x.reshape(b, c, h, 3, s)
        .transpose(3, 0, 1, 2, 4)
        .reshape(3 * b, c * h * s)
        .astype(jnp.bfloat16)
    )
    z_full = mlp3_pallas(x_stacked, w1, b1, w2, b2, w3, b3)   # (3B, 128) f32
    z = z_full[:, :latent_dim].reshape(3, b, 2, 3)
    # PyTorch forward assembles:
    #   c_preds[b] = [z0[b,0:3], z1[b,0:3], z2[b,0:3], z0[b,3:6], z1[b,3:6], z2[b,3:6]]
    c_preds = jnp.transpose(z, (1, 2, 0, 3)).reshape(b, 3 * latent_dim)
    return c_preds


class TripleMLPPallas:
    def __init__(self, key, img_channels=3, img_concept_size=28, latent_dim=6):
        assert latent_dim == 6, "forward is only well defined for latent_dim=6"
        self.img_channels = img_channels
        self.img_concept_size = img_concept_size
        self.latent_dim = latent_dim
        d_in = img_channels * img_concept_size * img_concept_size

        def linear_init(k, fan_in, fan_out):
            # Deterministic PyTorch-style uniform(-1/sqrt(fan_in), 1/sqrt(fan_in)).
            kw, kb = jax.random.split(k)
            bound = 1.0 / jnp.sqrt(fan_in)
            w = jax.random.uniform(kw, (fan_in, fan_out), jnp.float32, -bound, bound)
            b = jax.random.uniform(kb, (1, fan_out), jnp.float32, -bound, bound)
            return w, b

        k1, k2, k3 = jax.random.split(key, 3)
        w1, b1 = linear_init(k1, d_in, D_H1)
        w2, b2 = linear_init(k2, D_H1, D_H2)
        w3, b3 = linear_init(k3, D_H2, latent_dim)

        # bf16 MXU operands; biases stay f32. W3/b3 zero-padded to 128 lanes so
        # the kernel output is lane-dense (unmasked stores).
        self.w1 = w1.astype(jnp.bfloat16)
        self.w2 = w2.astype(jnp.bfloat16)
        self.w3 = (
            jnp.zeros((D_H2, OUT_PAD), jnp.float32)
            .at[:, :latent_dim].set(w3)
            .astype(jnp.bfloat16)
        )
        self.b1 = b1
        self.b2 = b2
        self.b3 = jnp.zeros((1, OUT_PAD), jnp.float32).at[:, :latent_dim].set(b3)

    def __call__(self, x):
        # x: (B, C, H, W=3*img_concept_size), NCHW, float32
        c_preds = _triple_mlp_forward(
            x, self.w1, self.b1, self.w2, self.b2, self.w3, self.b3,
            img_concept_size=self.img_concept_size, latent_dim=self.latent_dim,
        )
        return c_preds, 0


def _reference(model, x):
    """Pure-JAX reference of the same forward (same bf16 operands, f32 acc)."""
    b = x.shape[0]
    s = model.img_concept_size
    outs = []
    for i in range(3):
        xf = x[:, :, :, i * s:(i + 1) * s].reshape(b, -1).astype(jnp.bfloat16)
        h1 = jnp.maximum(
            jnp.dot(xf, model.w1, preferred_element_type=jnp.float32) + model.b1, 0.0
        )
        h2 = jnp.maximum(
            jnp.dot(h1.astype(jnp.bfloat16), model.w2,
                    preferred_element_type=jnp.float32) + model.b2, 0.0
        )
        o = (
            jnp.dot(h2.astype(jnp.bfloat16), model.w3,
                    preferred_element_type=jnp.float32) + model.b3
        )
        outs.append(o[:, :model.latent_dim])  # (B, 6)
    parts = []
    for chunk in range(2):
        for i in range(3):
            parts.append(outs[i][:, 3 * chunk:3 * chunk + 3])
    return jnp.concatenate(parts, axis=-1)


if __name__ == "__main__":
    key = jax.random.PRNGKey(0)
    k_param, k_x1, k_x2 = jax.random.split(key, 3)

    model = TripleMLPPallas(k_param, img_channels=3, img_concept_size=28,
                            latent_dim=6)

    # Small batch: single (partial) block, grid=(1,).
    x_small = jax.random.normal(k_x1, (2, 3, 28, 3 * 28), dtype=jnp.float32)
    c_small, zero = model(x_small)
    c_small = jax.block_until_ready(c_small)
    ref_small = _reference(model, x_small)
    assert c_small.shape == (2, 18), c_small.shape
    assert zero == 0
    assert jnp.allclose(c_small, ref_small, atol=2e-3, rtol=2e-3), (
        float(jnp.max(jnp.abs(c_small - ref_small)))
    )

    # Larger batch: exercises the even >=2-tile parallel grid with a partial
    # last block (M=150 -> tile_m=80, grid=(2,), last block 70 rows).
    x_big = jax.random.normal(k_x2, (50, 3, 28, 3 * 28), dtype=jnp.float32)
    c_big, _ = model(x_big)
    c_big = jax.block_until_ready(c_big)
    ref_big = _reference(model, x_big)
    assert c_big.shape == (50, 18), c_big.shape
    assert jnp.allclose(c_big, ref_big, atol=2e-3, rtol=2e-3), (
        float(jnp.max(jnp.abs(c_big - ref_big)))
    )

    print("KERNEL_OK")
</pallas_src>

<mosaic_0001>
module attributes {stable_mosaic.version = 11 : i64} {
  func.func @_mlp3_kernel(%arg0: i32, %arg1: memref<16x2352xbf16, #tpu.memory_space<vmem>>, %arg2: memref<2352x256xbf16, #tpu.memory_space<vmem>>, %arg3: memref<1x256xf32, #tpu.memory_space<vmem>>, %arg4: memref<256x128xbf16, #tpu.memory_space<vmem>>, %arg5: memref<1x128xf32, #tpu.memory_space<vmem>>, %arg6: memref<128x128xbf16, #tpu.memory_space<vmem>>, %arg7: memref<1x128xf32, #tpu.memory_space<vmem>>, %arg8: memref<16x128xf32, #tpu.memory_space<vmem>>) attributes {dimension_semantics = [#tpu.dimension_semantics<parallel>], iteration_bounds = array<i64: 1>, scalar_prefetch = 0 : i64, scratch_operands = 0 : i64, tpu.core_type = #tpu.core_type<tc>, window_params = [{transform_indices = @transform_0, window_bounds = array<i64: 16, 2352>}, {pipeline_mode = #tpu.pipeline_mode<synchronous>, transform_indices = @transform_1, window_bounds = array<i64: 2352, 256>}, {pipeline_mode = #tpu.pipeline_mode<synchronous>, transform_indices = @transform_2, window_bounds = array<i64: 1, 256>}, {pipeline_mode = #tpu.pipeline_mode<synchronous>, transform_indices = @transform_3, window_bounds = array<i64: 256, 128>}, {pipeline_mode = #tpu.pipeline_mode<synchronous>, transform_indices = @transform_4, window_bounds = array<i64: 1, 128>}, {pipeline_mode = #tpu.pipeline_mode<synchronous>, transform_indices = @transform_5, window_bounds = array<i64: 128, 128>}, {pipeline_mode = #tpu.pipeline_mode<synchronous>, transform_indices = @transform_6, window_bounds = array<i64: 1, 128>}, {transform_indices = @transform_7, window_bounds = array<i64: 16, 128>}]} {
    %c0 = arith.constant 0 : index
    %c0_0 = arith.constant 0 : index
    %0 = vector.load %arg1[%c0, %c0_0] : memref<16x2352xbf16, #tpu.memory_space<vmem>>, vector<16x2352xbf16>
    %c0_1 = arith.constant 0 : index
    %c0_2 = arith.constant 0 : index
    %1 = vector.load %arg2[%c0_1, %c0_2] : memref<2352x256xbf16, #tpu.memory_space<vmem>>, vector<2352x256xbf16>
    %cst = arith.constant dense<0.000000e+00> : vector<16x256xf32>
    %2 = tpu.matmul %0, %1, %cst {dimension_numbers = #tpu.dot_dimension_numbers<[1], [0], [0], [1], [0, 0, 1, 1], [], []>} : vector<16x2352xbf16>, vector<2352x256xbf16>, vector<16x256xf32> -> vector<16x256xf32>
    %c0_3 = arith.constant 0 : index
    %c0_4 = arith.constant 0 : index
    %3 = vector.load %arg3[%c0_3, %c0_4] : memref<1x256xf32, #tpu.memory_space<vmem>>, vector<1x256xf32>
    %4 = vector.broadcast %3 : vector<1x256xf32> to vector<16x256xf32>
    %5 = arith.addf %2, %4 : vector<16x256xf32>
    %cst_5 = arith.constant 0.000000e+00 : f32
    %6 = vector.broadcast %cst_5 : f32 to vector<16x256xf32>
    %7 = arith.maximumf %5, %6 : vector<16x256xf32>
    %8 = arith.truncf %7 : vector<16x256xf32> to vector<16x256xbf16>
    %c0_6 = arith.constant 0 : index
    %c0_7 = arith.constant 0 : index
    %9 = vector.load %arg4[%c0_6, %c0_7] : memref<256x128xbf16, #tpu.memory_space<vmem>>, vector<256x128xbf16>
    %cst_8 = arith.constant dense<0.000000e+00> : vector<16x128xf32>
    %10 = tpu.matmul %8, %9, %cst_8 {dimension_numbers = #tpu.dot_dimension_numbers<[1], [0], [0], [1], [0, 0, 1, 1], [], []>} : vector<16x256xbf16>, vector<256x128xbf16>, vector<16x128xf32> -> vector<16x128xf32>
    %c0_9 = arith.constant 0 : index
    %c0_10 = arith.constant 0 : index
    %11 = vector.load %arg5[%c0_9, %c0_10] : memref<1x128xf32, #tpu.memory_space<vmem>>, vector<1x128xf32>
    %12 = vector.broadcast %11 : vector<1x128xf32> to vector<16x128xf32>
    %13 = arith.addf %10, %12 : vector<16x128xf32>
    %cst_11 = arith.constant 0.000000e+00 : f32
    %14 = vector.broadcast %cst_11 : f32 to vector<16x128xf32>
    %15 = arith.maximumf %13, %14 : vector<16x128xf32>
    %16 = arith.truncf %15 : vector<16x128xf32> to vector<16x128xbf16>
    %c0_12 = arith.constant 0 : index
    %c0_13 = arith.constant 0 : index
    %17 = vector.load %arg6[%c0_12, %c0_13] : memref<128x128xbf16, #tpu.memory_space<vmem>>, vector<128x128xbf16>
    %cst_14 = arith.constant dense<0.000000e+00> : vector<16x128xf32>
    %18 = tpu.matmul %16, %17, %cst_14 {dimension_numbers = #tpu.dot_dimension_numbers<[1], [0], [0], [1], [0, 0, 1, 1], [], []>} : vector<16x128xbf16>, vector<128x128xbf16>, vector<16x128xf32> -> vector<16x128xf32>
    %c0_15 = arith.constant 0 : index
    %c0_16 = arith.constant 0 : index
    %19 = vector.load %arg7[%c0_15, %c0_16] : memref<1x128xf32, #tpu.memory_space<vmem>>, vector<1x128xf32>
    %20 = vector.broadcast %19 : vector<1x128xf32> to vector<16x128xf32>
    %21 = arith.addf %18, %20 : vector<16x128xf32>
    %c0_17 = arith.constant 0 : index
    %c0_18 = arith.constant 0 : index
    %22 = vector.load %arg8[%c0_17, %c0_18] : memref<16x128xf32, #tpu.memory_space<vmem>>, vector<16x128xf32>
    tpu.vector_store %arg8[%c0_17, %c0_18], %21 {strides = array<i32>} : memref<16x128xf32, #tpu.memory_space<vmem>>, vector<16x128xf32>,
    return
  }
  func.func @transform_0(%arg0: i32) -> (i32, i32) {
    %c0_i32 = arith.constant 0 : i32
    %c0_i32_0 = arith.constant 0 : i32
    return %arg0, %c0_i32 : i32, i32
  }
  func.func @transform_1(%arg0: i32) -> (i32, i32) {
    %c0_i32 = arith.constant 0 : i32
    %c0_i32_0 = arith.constant 0 : i32
    %c0_i32_1 = arith.constant 0 : i32
    return %c0_i32, %c0_i32_0 : i32, i32
  }
  func.func @transform_2(%arg0: i32) -> (i32, i32) {
    %c0_i32 = arith.constant 0 : i32
    %c0_i32_0 = arith.constant 0 : i32
    %c0_i32_1 = arith.constant 0 : i32
    return %c0_i32, %c0_i32_0 : i32, i32
  }
  func.func @transform_3(%arg0: i32) -> (i32, i32) {
    %c0_i32 = arith.constant 0 : i32
    %c0_i32_0 = arith.constant 0 : i32
    %c0_i32_1 = arith.constant 0 : i32
    return %c0_i32, %c0_i32_0 : i32, i32
  }
  func.func @transform_4(%arg0: i32) -> (i32, i32) {
    %c0_i32 = arith.constant 0 : i32
    %c0_i32_0 = arith.constant 0 : i32
    %c0_i32_1 = arith.constant 0 : i32
    return %c0_i32, %c0_i32_0 : i32, i32
  }
  func.func @transform_5(%arg0: i32) -> (i32, i32) {
    %c0_i32 = arith.constant 0 : i32
    %c0_i32_0 = arith.constant 0 : i32
    %c0_i32_1 = arith.constant 0 : i32
    return %c0_i32, %c0_i32_0 : i32, i32
  }
  func.func @transform_6(%arg0: i32) -> (i32, i32) {
    %c0_i32 = arith.constant 0 : i32
    %c0_i32_0 = arith.constant 0 : i32
    %c0_i32_1 = arith.constant 0 : i32
    return %c0_i32, %c0_i32_0 : i32, i32
  }
  func.func @transform_7(%arg0: i32) -> (i32, i32) {
    %c0_i32 = arith.constant 0 : i32
    %c0_i32_0 = arith.constant 0 : i32
    return %arg0, %c0_i32 : i32, i32
  }
}

</mosaic_0001>

<llo_original>
// kernel: _triple_mlp_forward.1
$region0: #{_triple_mlp_forward.1}
  #allocation0 [shape = 'u32[]', space=smem, size = 0x4, offset = 0x4, fixed_abs, tag = 'smem constant byte address 0x4 - core index']
  #allocation1 [shape = 'u32[144,128]{1,0:T(1,128)}', space=vmem, size = 0x12000, scoped, tag = 'internal scratch']
  %s0 = inlined_call_operand.vmem [shape: bf16[6,2352], index: 0, kind: input, shape index: {}]
  %s1 = inlined_call_operand.hbm [shape: bf16[2352,256], index: 1, kind: input, shape index: {}]
  %s2 = inlined_call_operand.hbm [shape: f32[1,256], index: 2, kind: input, shape index: {}]
  %s3 = inlined_call_operand.hbm [shape: bf16[256,128], index: 3, kind: input, shape index: {}]
  %s4 = inlined_call_operand.hbm [shape: f32[1,128], index: 4, kind: input, shape index: {}]
  %s5 = inlined_call_operand.hbm [shape: bf16[128,128], index: 5, kind: input, shape index: {}]
  %s6 = inlined_call_operand.hbm [shape: f32[1,128], index: 6, kind: input, shape index: {}]
  %s7 = inlined_call_operand.vmem [shape: f32[6,128], index: 7, kind: output, shape index: {}]
  %s8 = sld [smem:[#allocation0]]
  $region96: #{_triple_mlp_forward.1} parent=0
    _
  %s10 = ssub.s32 1, %s8
  %s11 = scalar_select 0, %s10, %s8
  $region1: #{_triple_mlp_forward.1} parent=0
    #allocation2 [shape = 'u8[1204224]{0}', space=vmem, size = 0x126000, scoped, tag = 'input window, operand 1, single buffered']
    #allocation3 [shape = 's32[1]{0}', space=sflag, size = 0x4, scoped, tag = 'scoped memory for _triple_mlp_forward.1']
    #allocation4 [shape = 'u8[1024]{0}', space=vmem, size = 0x400, scoped, tag = 'input window, operand 2, single buffered']
    #allocation5 [shape = 's32[1]{0}', space=sflag, size = 0x4, scoped, tag = 'scoped memory for _triple_mlp_forward.1']
    #allocation6 [shape = 'u8[65536]{0}', space=vmem, size = 0x10000, scoped, tag = 'input window, operand 3, single buffered']
    #allocation7 [shape = 'u8[512]{0}', space=vmem, size = 0x400, scoped, tag = 'input window, operand 4, single buffered']
    #allocation8 [shape = 's32[1]{0}', space=sflag, size = 0x4, scoped, tag = 'scoped memory for _triple_mlp_forward.1']
    #allocation9 [shape = 'u8[32768]{0}', space=vmem, size = 0x8000, scoped, tag = 'input window, operand 5, single buffered']
    #allocation10 [shape = 'u8[512]{0}', space=vmem, size = 0x400, scoped, tag = 'input window, operand 6, single buffered']
    #allocation11 [shape = 's32[1]{0}', space=sflag, size = 0x4, scoped, tag = 'scoped memory for _triple_mlp_forward.1']
    #allocation12 [shape = 'u8[8192]{0}', space=vmem, size = 0x2000, scoped, tag = 'output window, operand 0, single buffered']
    %12 = vsyncpa [#allocation3], 0
    %13 = vsyncpa [#allocation5], 0
    %14 = vsyncpa [#allocation8], 0
    %15 = vsyncpa [#allocation11], 0
    // Predicated region
    $region2: #{_triple_mlp_forward.1} parent=1 // pred_check
      _
    $region3: #{_triple_mlp_forward.1} parent=1 // pred_check_branch
      %17 = sbr.rel (0) target = $region5
    $region4: #{_triple_mlp_forward.1} parent=1 // pred_region
      _
    $region5: #{_triple_mlp_forward.1} parent=1 // pred_fallthru
      _
    // Predicated region
    $region6: #{_triple_mlp_forward.1} parent=1 // pred_check
      _
    $region7: #{_triple_mlp_forward.1} parent=1 // pred_check_branch
      %19 = sbr.rel (0) target = $region9
    $region8: #{_triple_mlp_forward.1} parent=1 // pred_region
      %s21 = ssub.s32 37632, 37632
      %22 = vsyncadd [#allocation3], %s21
      %s23 = sshll.u32 [#allocation2], 4
      %s24 = int_to_ptr.vmem [resolvable:$true] %s23
      %29 = dma.hbm_to_vmem [thread:$0]  %s1, 37632, %s24, [#allocation3], 128, 128, 8
    $region9: #{_triple_mlp_forward.1} parent=1 // pred_fallthru
      _
    // Predicated region
    $region10: #{_triple_mlp_forward.1} parent=1 // pred_check
      _
    $region11: #{_triple_mlp_forward.1} parent=1 // pred_check_branch
      %31 = sbr.rel (0) target = $region13
    $region12: #{_triple_mlp_forward.1} parent=1 // pred_region
      %s33 = ssub.s32 32, 32
      %34 = vsyncadd [#allocation5], %s33
      %s36 = sshll.u32 [#allocation4], 4
      %s37 = int_to_ptr.vmem [resolvable:$true] %s36
      %39 = dma.hbm_to_vmem [thread:$0]  %s2, 32, %s37, [#allocation5]
    $region13: #{_triple_mlp_forward.1} parent=1 // pred_fallthru
      _
    // Predicated region
    $region14: #{_triple_mlp_forward.1} parent=1 // pred_check
      _
    $region15: #{_triple_mlp_forward.1} parent=1 // pred_check_branch
      %41 = sbr.rel (0) target = $region17
    $region16: #{_triple_mlp_forward.1} parent=1 // pred_region
      %s43 = ssub.s32 2048, 2048
      %44 = vsyncadd [#allocation5], %s43
      %s45 = sshll.u32 [#allocation6], 4
      %s46 = int_to_ptr.vmem [resolvable:$true] %s45
      %51 = dma.hbm_to_vmem [thread:$0]  %s3, 2048, %s46, [#allocation5], 64, 64, 4
    $region17: #{_triple_mlp_forward.1} parent=1 // pred_fallthru
      _
    // Predicated region
    $region18: #{_triple_mlp_forward.1} parent=1 // pred_check
      _
    $region19: #{_triple_mlp_forward.1} parent=1 // pred_check_branch
      %53 = sbr.rel (0) target = $region21
    $region20: #{_triple_mlp_forward.1} parent=1 // pred_region
      %s55 = ssub.s32 16, 16
      %56 = vsyncadd [#allocation8], %s55
      %s58 = sshll.u32 [#allocation7], 4
      %s59 = int_to_ptr.vmem [resolvable:$true] %s58
      %61 = dma.hbm_to_vmem [thread:$0]  %s4, 16, %s59, [#allocation8]
    $region21: #{_triple_mlp_forward.1} parent=1 // pred_fallthru
      _
    // Predicated region
    $region22: #{_triple_mlp_forward.1} parent=1 // pred_check
      _
    $region23: #{_triple_mlp_forward.1} parent=1 // pred_check_branch
      %63 = sbr.rel (0) target = $region25
    $region24: #{_triple_mlp_forward.1} parent=1 // pred_region
      %s65 = ssub.s32 1024, 1024
      %66 = vsyncadd [#allocation8], %s65
      %s67 = sshll.u32 [#allocation9], 4
      %s68 = int_to_ptr.vmem [resolvable:$true] %s67
      %73 = dma.hbm_to_vmem [thread:$0]  %s5, 1024, %s68, [#allocation8], 64, 64, 4
    $region25: #{_triple_mlp_forward.1} parent=1 // pred_fallthru
      _
    // Predicated region
    $region26: #{_triple_mlp_forward.1} parent=1 // pred_check
      _
    $region27: #{_triple_mlp_forward.1} parent=1 // pred_check_branch
      %75 = sbr.rel (0) target = $region29
    $region28: #{_triple_mlp_forward.1} parent=1 // pred_region
      %s77 = ssub.s32 16, 16
      %78 = vsyncadd [#allocation11], %s77
      %s80 = sshll.u32 [#allocation10], 4
      %s81 = int_to_ptr.vmem [resolvable:$true] %s80
      %83 = dma.hbm_to_vmem [thread:$0]  %s6, 16, %s81, [#allocation11]
    $region29: #{_triple_mlp_forward.1} parent=1 // pred_fallthru
      _
    // Predicated region
    $region30: #{_triple_mlp_forward.1} parent=1 // pred_check
      _
    $region31: #{_triple_mlp_forward.1} parent=1 // pred_check_branch
      %85 = sbr.rel (0) target = $region33
    $region32: #{_triple_mlp_forward.1} parent=1 // pred_region
      %86 = dma.done [#allocation3], 37632
    $region33: #{_triple_mlp_forward.1} parent=1 // pred_fallthru
      _
    // Predicated region
    $region34: #{_triple_mlp_forward.1} parent=1 // pred_check
      _
    $region35: #{_triple_mlp_forward.1} parent=1 // pred_check_branch
      %88 = sbr.rel (0) target = $region37
    $region36: #{_triple_mlp_forward.1} parent=1 // pred_region
      %89 = dma.done [#allocation5], 32
    $region37: #{_triple_mlp_forward.1} parent=1 // pred_fallthru
      _
    // Predicated region
    $region38: #{_triple_mlp_forward.1} parent=1 // pred_check
      _
    $region39: #{_triple_mlp_forward.1} parent=1 // pred_check_branch
      %91 = sbr.rel (0) target = $region41
    $region40: #{_triple_mlp_forward.1} parent=1 // pred_region
      %92 = dma.done [#allocation5], 2048
    $region41: #{_triple_mlp_forward.1} parent=1 // pred_fallthru
      _
    // Predicated region
    $region42: #{_triple_mlp_forward.1} parent=1 // pred_check
      _
    $region43: #{_triple_mlp_forward.1} parent=1 // pred_check_branch
      %94 = sbr.rel (0) target = $region45
    $region44: #{_triple_mlp_forward.1} parent=1 // pred_region
      %95 = dma.done [#allocation8], 16
    $region45: #{_triple_mlp_forward.1} parent=1 // pred_fallthru
      _
    // Predicated region
    $region46: #{_triple_mlp_forward.1} parent=1 // pred_check
      _
    $region47: #{_triple_mlp_forward.1} parent=1 // pred_check_branch
      %97 = sbr.rel (0) target = $region49
    $region48: #{_triple_mlp_forward.1} parent=1 // pred_region
      %98 = dma.done [#allocation8], 1024
    $region49: #{_triple_mlp_forward.1} parent=1 // pred_fallthru
      _
    // Predicated region
    $region50: #{_triple_mlp_forward.1} parent=1 // pred_check
      _
    $region51: #{_triple_mlp_forward.1} parent=1 // pred_check_branch
      %100 = sbr.rel (0) target = $region53
    $region52: #{_triple_mlp_forward.1} parent=1 // pred_region
      %101 = dma.done [#allocation11], 16
    $region53: #{_triple_mlp_forward.1} parent=1 // pred_fallthru
      _
    %v103 = vld [vmem:[%s0] sm:$0xff]
    %v104 = vld [vmem:[%s0 + $0x8] sm:$0xff]
    %v105 = vld [vmem:[%s0 + $0x10] sm:$0xff]
    %v106 = vld [vmem:[%s0 + $0x18] sm:$0xff]
    %v107 = vld [vmem:[%s0 + $0x20] sm:$0xff]
    %v108 = vld [vmem:[%s0 + $0x28] sm:$0xff]
    %v109 = vld [vmem:[%s0 + $0x30] sm:$0xff]
    %v110 = vld [vmem:[%s0 + $0x38] sm:$0xff]
    %v111 = vld [vmem:[%s0 + $0x40] sm:$0xff]
    %v112 = vld [vmem:[%s0 + $0x48] sm:$0xf]
    %v113 = vld [vmem:[%s0 + $0x4c] sm:$0xff]
    %v114 = vld [vmem:[%s0 + $0x54] sm:$0xff]
    %v115 = vld [vmem:[%s0 + $0x5c] sm:$0xff]
    %v116 = vld [vmem:[%s0 + $0x64] sm:$0xff]
    %v117 = vld [vmem:[%s0 + $0x6c] sm:$0xff]
    %v118 = vld [vmem:[%s0 + $0x74] sm:$0xff]
    %v119 = vld [vmem:[%s0 + $0x7c] sm:$0xff]
    %v120 = vld [vmem:[%s0 + $0x84] sm:$0xff]
    %v121 = vld [vmem:[%s0 + $0x8c] sm:$0xff]
    %v122 = vld [vmem:[%s0 + $0x94] sm:$0xf]
    %v123 = vld [vmem:[#allocation2] sm:$0xff]
    %v124 = vld [vmem:[#allocation2 + $0x8] sm:$0xff]
    %v125 = vld [vmem:[#allocation2 + $0x10] sm:$0xff]
    %v126 = vld [vmem:[#allocation2 + $0x18] sm:$0xff]
    %v127 = vld [vmem:[#allocation2 + $0x20] sm:$0xff]
    %v128 = vld [vmem:[#allocation2 + $0x28] sm:$0xff]
    %v129 = vld [vmem:[#allocation2 + $0x30] sm:$0xff]
    %v130 = vld [vmem:[#allocation2 + $0x38] sm:$0xff]
    %v131 = vld [vmem:[#allocation2 + $0x40] sm:$0xff]
    %v132 = vld [vmem:[#allocation2 + $0x48] sm:$0xff]
    %v133 = vld [vmem:[#allocation2 + $0x50] sm:$0xff]
    %v134 = vld [vmem:[#allocation2 + $0x58] sm:$0xff]
    %v135 = vld [vmem:[#allocation2 + $0x60] sm:$0xff]
    %v136 = vld [vmem:[#allocation2 + $0x68] sm:$0xff]
    %v137 = vld [vmem:[#allocation2 + $0x70] sm:$0xff]
    %v138 = vld [vmem:[#allocation2 + $0x78] sm:$0xff]
    %v139 = vld [vmem:[#allocation2 + $0x80] sm:$0xff]
    %v140 = vld [vmem:[#allocation2 + $0x88] sm:$0xff]
    %v141 = vld [vmem:[#allocation2 + $0x90] sm:$0xff]
    %v142 = vld [vmem:[#allocation2 + $0x98] sm:$0xff]
    %v143 = vld [vmem:[#allocation2 + $0xa0] sm:$0xff]
    %v144 = vld [vmem:[#allocation2 + $0xa8] sm:$0xff]
    %v145 = vld [vmem:[#allocation2 + $0xb0] sm:$0xff]
    %v146 = vld [vmem:[#allocation2 + $0xb8] sm:$0xff]
    %v147 = vld [vmem:[#allocation2 + $0xc0] sm:$0xff]
    %v148 = vld [vmem:[#allocation2 + $0xc8] sm:$0xff]
    %v149 = vld [vmem:[#allocation2 + $0xd0] sm:$0xff]
    %v150 = vld [vmem:[#allocation2 + $0xd8] sm:$0xff]
    %v151 = vld [vmem:[#allocation2 + $0xe0] sm:$0xff]
    %v152 = vld [vmem:[#allocation2 + $0xe8] sm:$0xff]
    %v153 = vld [vmem:[#allocation2 + $0xf0] sm:$0xff]
    %v154 = vld [vmem:[#allocation2 + $0xf8] sm:$0xff]
    %v155 = vld [vmem:[#allocation2 + $0x100] sm:$0xff]
    %v156 = vld [vmem:[#allocation2 + $0x108] sm:$0xff]
    %v157 = vld [vmem:[#allocation2 + $0x110] sm:$0xff]
    %v158 = vld [vmem:[#allocation2 + $0x118] sm:$0xff]
    %v159 = vld [vmem:[#allocation2 + $0x120] sm:$0xff]
    %v160 = vld [vmem:[#allocation2 + $0x128] sm:$0xff]
    %v161 = vld [vmem:[#allocation2 + $0x130] sm:$0xff]
    %v162 = vld [vmem:[#allocation2 + $0x138] sm:$0xff]
    %v163 = vld [vmem:[#allocation2 + $0x140] sm:$0xff]
    %v164 = vld [vmem:[#allocation2 + $0x148] sm:$0xff]
    %v165 = vld [vmem:[#allocation2 + $0x150] sm:$0xff]
    %v166 = vld [vmem:[#allocation2 + $0x158] sm:$0xff]
    %v167 = vld [vmem:[#allocation2 + $0x160] sm:$0xff]
    %v168 = vld [vmem:[#allocation2 + $0x168] sm:$0xff]
    %v169 = vld [vmem:[#allocation2 + $0x170] sm:$0xff]
    %v170 = vld [vmem:[#allocation2 + $0x178] sm:$0xff]
    %v171 = vld [vmem:[#allocation2 + $0x180] sm:$0xff]
    %v172 = vld [vmem:[#allocation2 + $0x188] sm:$0xff]
    %v173 = vld [vmem:[#allocation2 + $0x190] sm:$0xff]
    %v174 = vld [vmem:[#allocation2 + $0x198] sm:$0xff]
    %v175 = vld [vmem:[#allocation2 + $0x1a0] sm:$0xff]
    %v176 = vld [vmem:[#allocation2 + $0x1a8] sm:$0xff]
    %v177 = vld [vmem:[#allocation2 + $0x1b0] sm:$0xff]
    %v178 = vld [vmem:[#allocation2 + $0x1b8] sm:$0xff]
    %v179 = vld [vmem:[#allocation2 + $0x1c0] sm:$0xff]
    %v180 = vld [vmem:[#allocation2 + $0x1c8] sm:$0xff]
    %v181 = vld [vmem:[#allocation2 + $0x1d0] sm:$0xff]
    %v182 = vld [vmem:[#allocation2 + $0x1d8] sm:$0xff]
    %v183 = vld [vmem:[#allocation2 + $0x1e0] sm:$0xff]
    %v184 = vld [vmem:[#allocation2 + $0x1e8] sm:$0xff]
    %v185 = vld [vmem:[#allocation2 + $0x1f0] sm:$0xff]
    %v186 = vld [vmem:[#allocation2 + $0x1f8] sm:$0xff]
    %v187 = vld [vmem:[#allocation2 + $0x200] sm:$0xff]
    %v188 = vld [vmem:[#allocation2 + $0x208] sm:$0xff]
    %v189 = vld [vmem:[#allocation2 + $0x210] sm:$0xff]
    %v190 = vld [vmem:[#allocation2 + $0x218] sm:$0xff]
    %v191 = vld [vmem:[#allocation2 + $0x220] sm:$0xff]
    %v192 = vld [vmem:[#allocation2 + $0x228] sm:$0xff]
    %v193 = vld [vmem:[#allocation2 + $0x230] sm:$0xff]
    %v194 = vld [vmem:[#allocation2 + $0x238] sm:$0xff]
    %v195 = vld [vmem:[#allocation2 + $0x240] sm:$0xff]
    %v196 = vld [vmem:[#allocation2 + $0x248] sm:$0xff]
    %v197 = vld [vmem:[#allocation2 + $0x250] sm:$0xff]
    %v198 = vld [vmem:[#allocation2 + $0x258] sm:$0xff]
    %v199 = vld [vmem:[#allocation2 + $0x260] sm:$0xff]
    %v200 = vld [vmem:[#allocation2 + $0x268] sm:$0xff]
    %v201 = vld [vmem:[#allocation2 + $0x270] sm:$0xff]
    %v202 = vld [vmem:[#allocation2 + $0x278] sm:$0xff]
    %v203 = vld [vmem:[#allocation2 + $0x280] sm:$0xff]
    %v204 = vld [vmem:[#allocation2 + $0x288] sm:$0xff]
    %v205 = vld [vmem:[#allocation2 + $0x290] sm:$0xff]
    %v206 = vld [vmem:[#allocation2 + $0x298] sm:$0xff]
    %v207 = vld [vmem:[#allocation2 + $0x2a0] sm:$0xff]
    %v208 = vld [vmem:[#allocation2 + $0x2a8] sm:$0xff]
    %v209 = vld [vmem:[#allocation2 + $0x2b0] sm:$0xff]
    %v210 = vld [vmem:[#allocation2 + $0x2b8] sm:$0xff]
    %v211 = vld [vmem:[#allocation2 + $0x2c0] sm:$0xff]
    %v212 = vld [vmem:[#allocation2 + $0x2c8] sm:$0xff]
    %v213 = vld [vmem:[#allocation2 + $0x2d0] sm:$0xff]
    %v214 = vld [vmem:[#allocation2 + $0x2d8] sm:$0xff]
    %v215 = vld [vmem:[#allocation2 + $0x2e0] sm:$0xff]
    %v216 = vld [vmem:[#allocation2 + $0x2e8] sm:$0xff]
    %v217 = vld [vmem:[#allocation2 + $0x2f0] sm:$0xff]
    %v218 = vld [vmem:[#allocation2 + $0x2f8] sm:$0xff]
    %v219 = vld [vmem:[#allocation2 + $0x300] sm:$0xff]
    %v220 = vld [vmem:[#allocation2 + $0x308] sm:$0xff]
    %v221 = vld [vmem:[#allocation2 + $0x310] sm:$0xff]
    %v222 = vld [vmem:[#allocation2 + $0x318] sm:$0xff]
    %v223 = vld [vmem:[#allocation2 + $0x320] sm:$0xff]
    %v224 = vld [vmem:[#allocation2 + $0x328] sm:$0xff]
    %v225 = vld [vmem:[#allocation2 + $0x330] sm:$0xff]
    %v226 = vld [vmem:[#allocation2 + $0x338] sm:$0xff]
    %v227 = vld [vmem:[#allocation2 + $0x340] sm:$0xff]
    %v228 = vld [vmem:[#allocation2 + $0x348] sm:$0xff]
    %v229 = vld [vmem:[#allocation2 + $0x350] sm:$0xff]
    %v230 = vld [vmem:[#allocation2 + $0x358] sm:$0xff]
    %v231 = vld [vmem:[#allocation2 + $0x360] sm:$0xff]
    %v232 = vld [vmem:[#allocation2 + $0x368] sm:$0xff]
    %v233 = vld [vmem:[#allocation2 + $0x370] sm:$0xff]
    %v234 = vld [vmem:[#allocation2 + $0x378] sm:$0xff]
    %v235 = vld [vmem:[#allocation2 + $0x380] sm:$0xff]
    %v236 = vld [vmem:[#allocation2 + $0x388] sm:$0xff]
    %v237 = vld [vmem:[#allocation2 + $0x390] sm:$0xff]
    %v238 = vld [vmem:[#allocation2 + $0x398] sm:$0xff]
    %v239 = vld [vmem:[#allocation2 + $0x3a0] sm:$0xff]
    %v240 = vld [vmem:[#allocation2 + $0x3a8] sm:$0xff]
    %v241 = vld [vmem:[#allocation2 + $0x3b0] sm:$0xff]
    %v242 = vld [vmem:[#allocation2 + $0x3b8] sm:$0xff]
    %v243 = vld [vmem:[#allocation2 + $0x3c0] sm:$0xff]
    %v244 = vld [vmem:[#allocation2 + $0x3c8] sm:$0xff]
    %v245 = vld [vmem:[#allocation2 + $0x3d0] sm:$0xff]
    %v246 = vld [vmem:[#allocation2 + $0x3d8] sm:$0xff]
    %v247 = vld [vmem:[#allocation2 + $0x3e0] sm:$0xff]
    %v248 = vld [vmem:[#allocation2 + $0x3e8] sm:$0xff]
    %v249 = vld [vmem:[#allocation2 + $0x3f0] sm:$0xff]
    %v250 = vld [vmem:[#allocation2 + $0x3f8] sm:$0xff]
    %v251 = vld [vmem:[#allocation2 + $0x400] sm:$0xff]
    %v252 = vld [vmem:[#allocation2 + $0x408] sm:$0xff]
    %v253 = vld [vmem:[#allocation2 + $0x410] sm:$0xff]
    %v254 = vld [vmem:[#allocation2 + $0x418] sm:$0xff]
    %v255 = vld [vmem:[#allocation2 + $0x420] sm:$0xff]
    %v256 = vld [vmem:[#allocation2 + $0x428] sm:$0xff]
    %v257 = vld [vmem:[#allocation2 + $0x430] sm:$0xff]
    %v258 = vld [vmem:[#allocation2 + $0x438] sm:$0xff]
    %v259 = vld [vmem:[#allocation2 + $0x440] sm:$0xff]
    %v260 = vld [vmem:[#allocation2 + $0x448] sm:$0xff]
    %v261 = vld [vmem:[#allocation2 + $0x450] sm:$0xff]
    %v262 = vld [vmem:[#allocation2 + $0x458] sm:$0xff]
    %v263 = vld [vmem:[#allocation2 + $0x460] sm:$0xff]
    %v264 = vld [vmem:[#allocation2 + $0x468] sm:$0xff]
    %v265 = vld [vmem:[#allocation2 + $0x470] sm:$0xff]
    %v266 = vld [vmem:[#allocation2 + $0x478] sm:$0xff]
    %v267 = vld [vmem:[#allocation2 + $0x480] sm:$0xff]
    %v268 = vld [vmem:[#allocation2 + $0x488] sm:$0xff]
    %v269 = vld [vmem:[#allocation2 + $0x490] sm:$0xff]
    %v270 = vld [vmem:[#allocation2 + $0x498] sm:$0xff]
    %v271 = vld [vmem:[#allocation2 + $0x4a0] sm:$0xff]
    %v272 = vld [vmem:[#allocation2 + $0x4a8] sm:$0xff]
    %v273 = vld [vmem:[#allocation2 + $0x4b0] sm:$0xff]
    %v274 = vld [vmem:[#allocation2 + $0x4b8] sm:$0xff]
    %v275 = vld [vmem:[#allocation2 + $0x4c0] sm:$0xff]
    %v276 = vld [vmem:[#allocation2 + $0x4c8] sm:$0xff]
    %v277 = vld [vmem:[#allocation2 + $0x4d0] sm:$0xff]
    %v278 = vld [vmem:[#allocation2 + $0x4d8] sm:$0xff]
    %v279 = vld [vmem:[#allocation2 + $0x4e0] sm:$0xff]
    %v280 = vld [vmem:[#allocation2 + $0x4e8] sm:$0xff]
    %v281 = vld [vmem:[#allocation2 + $0x4f0] sm:$0xff]
    %v282 = vld [vmem:[#allocation2 + $0x4f8] sm:$0xff]
    %v283 = vld [vmem:[#allocation2 + $0x500] sm:$0xff]
    %v284 = vld [vmem:[#allocation2 + $0x508] sm:$0xff]
    %v285 = vld [vmem:[#allocation2 + $0x510] sm:$0xff]
    %v286 = vld [vmem:[#allocation2 + $0x518] sm:$0xff]
    %v287 = vld [vmem:[#allocation2 + $0x520] sm:$0xff]
    %v288 = vld [vmem:[#allocation2 + $0x528] sm:$0xff]
    %v289 = vld [vmem:[#allocation2 + $0x530] sm:$0xff]
    %v290 = vld [vmem:[#allocation2 + $0x538] sm:$0xff]
    %v291 = vld [vmem:[#allocation2 + $0x540] sm:$0xff]
    %v292 = vld [vmem:[#allocation2 + $0x548] sm:$0xff]
    %v293 = vld [vmem:[#allocation2 + $0x550] sm:$0xff]
    %v294 = vld [vmem:[#allocation2 + $0x558] sm:$0xff]
    %v295 = vld [vmem:[#allocation2 + $0x560] sm:$0xff]
    %v296 = vld [vmem:[#allocation2 + $0x568] sm:$0xff]
    %v297 = vld [vmem:[#allocation2 + $0x570] sm:$0xff]
    %v298 = vld [vmem:[#allocation2 + $0x578] sm:$0xff]
    %v299 = vld [vmem:[#allocation2 + $0x580] sm:$0xff]
    %v300 = vld [vmem:[#allocation2 + $0x588] sm:$0xff]
    %v301 = vld [vmem:[#allocation2 + $0x590] sm:$0xff]
    %v302 = vld [vmem:[#allocation2 + $0x598] sm:$0xff]
    %v303 = vld [vmem:[#allocation2 + $0x5a0] sm:$0xff]
    %v304 = vld [vmem:[#allocation2 + $0x5a8] sm:$0xff]
    %v305 = vld [vmem:[#allocation2 + $0x5b0] sm:$0xff]
    %v306 = vld [vmem:[#allocation2 + $0x5b8] sm:$0xff]
    %v307 = vld [vmem:[#allocation2 + $0x5c0] sm:$0xff]
    %v308 = vld [vmem:[#allocation2 + $0x5c8] sm:$0xff]
    %v309 = vld [vmem:[#allocation2 + $0x5d0] sm:$0xff]
    %v310 = vld [vmem:[#allocation2 + $0x5d8] sm:$0xff]
    %v311 = vld [vmem:[#allocation2 + $0x5e0] sm:$0xff]
    %v312 = vld [vmem:[#allocation2 + $0x5e8] sm:$0xff]
    %v313 = vld [vmem:[#allocation2 + $0x5f0] sm:$0xff]
    %v314 = vld [vmem:[#allocation2 + $0x5f8] sm:$0xff]
    %v315 = vld [vmem:[#allocation2 + $0x600] sm:$0xff]
    %v316 = vld [vmem:[#allocation2 + $0x608] sm:$0xff]
    %v317 = vld [vmem:[#allocation2 + $0x610] sm:$0xff]
    %v318 = vld [vmem:[#allocation2 + $0x618] sm:$0xff]
    %v319 = vld [vmem:[#allocation2 + $0x620] sm:$0xff]
    %v320 = vld [vmem:[#allocation2 + $0x628] sm:$0xff]
    %v321 = vld [vmem:[#allocation2 + $0x630] sm:$0xff]
    %v322 = vld [vmem:[#allocation2 + $0x638] sm:$0xff]
    %v323 = vld [vmem:[#allocation2 + $0x640] sm:$0xff]
    %v324 = vld [vmem:[#allocation2 + $0x648] sm:$0xff]
    %v325 = vld [vmem:[#allocation2 + $0x650] sm:$0xff]
    %v326 = vld [vmem:[#allocation2 + $0x658] sm:$0xff]
    %v327 = vld [vmem:[#allocation2 + $0x660] sm:$0xff]
    %v328 = vld [vmem:[#allocation2 + $0x668] sm:$0xff]
    %v329 = vld [vmem:[#allocation2 + $0x670] sm:$0xff]
    %v330 = vld [vmem:[#allocation2 + $0x678] sm:$0xff]
    %v331 = vld [vmem:[#allocation2 + $0x680] sm:$0xff]
    %v332 = vld [vmem:[#allocation2 + $0x688] sm:$0xff]
    %v333 = vld [vmem:[#allocation2 + $0x690] sm:$0xff]
    %v334 = vld [vmem:[#allocation2 + $0x698] sm:$0xff]
    %v335 = vld [vmem:[#allocation2 + $0x6a0] sm:$0xff]
    %v336 = vld [vmem:[#allocation2 + $0x6a8] sm:$0xff]
    %v337 = vld [vmem:[#allocation2 + $0x6b0] sm:$0xff]
    %v338 = vld [vmem:[#allocation2 + $0x6b8] sm:$0xff]
    %v339 = vld [vmem:[#allocation2 + $0x6c0] sm:$0xff]
    %v340 = vld [vmem:[#allocation2 + $0x6c8] sm:$0xff]
    %v341 = vld [vmem:[#allocation2 + $0x6d0] sm:$0xff]
    %v342 = vld [vmem:[#allocation2 + $0x6d8] sm:$0xff]
    %v343 = vld [vmem:[#allocation2 + $0x6e0] sm:$0xff]
    %v344 = vld [vmem:[#allocation2 + $0x6e8] sm:$0xff]
    %v345 = vld [vmem:[#allocation2 + $0x6f0] sm:$0xff]
    %v346 = vld [vmem:[#allocation2 + $0x6f8] sm:$0xff]
    %v347 = vld [vmem:[#allocation2 + $0x700] sm:$0xff]
    %v348 = vld [vmem:[#allocation2 + $0x708] sm:$0xff]
    %v349 = vld [vmem:[#allocation2 + $0x710] sm:$0xff]
    %v350 = vld [vmem:[#allocation2 + $0x718] sm:$0xff]
    %v351 = vld [vmem:[#allocation2 + $0x720] sm:$0xff]
    %v352 = vld [vmem:[#allocation2 + $0x728] sm:$0xff]
    %v353 = vld [vmem:[#allocation2 + $0x730] sm:$0xff]
    %v354 = vld [vmem:[#allocation2 + $0x738] sm:$0xff]
    %v355 = vld [vmem:[#allocation2 + $0x740] sm:$0xff]
    %v356 = vld [vmem:[#allocation2 + $0x748] sm:$0xff]
    %v357 = vld [vmem:[#allocation2 + $0x750] sm:$0xff]
    %v358 = vld [vmem:[#allocation2 + $0x758] sm:$0xff]
    %v359 = vld [vmem:[#allocation2 + $0x760] sm:$0xff]
    %v360 = vld [vmem:[#allocation2 + $0x768] sm:$0xff]
    %v361 = vld [vmem:[#allocation2 + $0x770] sm:$0xff]
    %v362 = vld [vmem:[#allocation2 + $0x778] sm:$0xff]
    %v363 = vld [vmem:[#allocation2 + $0x780] sm:$0xff]
    %v364 = vld [vmem:[#allocation2 + $0x788] sm:$0xff]
    %v365 = vld [vmem:[#allocation2 + $0x790] sm:$0xff]
    %v366 = vld [vmem:[#allocation2 + $0x798] sm:$0xff]
    %v367 = vld [vmem:[#allocation2 + $0x7a0] sm:$0xff]
    %v368 = vld [vmem:[#allocation2 + $0x7a8] sm:$0xff]
    %v369 = vld [vmem:[#allocation2 + $0x7b0] sm:$0xff]
    %v370 = vld [vmem:[#allocation2 + $0x7b8] sm:$0xff]
    %v371 = vld [vmem:[#allocation2 + $0x7c0] sm:$0xff]
    %v372 = vld [vmem:[#allocation2 + $0x7c8] sm:$0xff]
    %v373 = vld [vmem:[#allocation2 + $0x7d0] sm:$0xff]
    %v374 = vld [vmem:[#allocation2 + $0x7d8] sm:$0xff]
    %v375 = vld [vmem:[#allocation2 + $0x7e0] sm:$0xff]
    %v376 = vld [vmem:[#allocation2 + $0x7e8] sm:$0xff]
    %v377 = vld [vmem:[#allocation2 + $0x7f0] sm:$0xff]
    %v378 = vld [vmem:[#allocation2 + $0x7f8] sm:$0xff]
    %v379 = vld [vmem:[#allocation2 + $0x800] sm:$0xff]
    %v380 = vld [vmem:[#allocation2 + $0x808] sm:$0xff]
    %v381 = vld [vmem:[#allocation2 + $0x810] sm:$0xff]
    %v382 = vld [vmem:[#allocation2 + $0x818] sm:$0xff]
    %v383 = vld [vmem:[#allocation2 + $0x820] sm:$0xff]
    %v384 = vld [vmem:[#allocation2 + $0x828] sm:$0xff]
    %v385 = vld [vmem:[#allocation2 + $0x830] sm:$0xff]
    %v386 = vld [vmem:[#allocation2 + $0x838] sm:$0xff]
    %v387 = vld [vmem:[#allocation2 + $0x840] sm:$0xff]
    %v388 = vld [vmem:[#allocation2 + $0x848] sm:$0xff]
    %v389 = vld [vmem:[#allocation2 + $0x850] sm:$0xff]
    %v390 = vld [vmem:[#allocation2 + $0x858] sm:$0xff]
    %v391 = vld [vmem:[#allocation2 + $0x860] sm:$0xff]
    %v392 = vld [vmem:[#allocation2 + $0x868] sm:$0xff]
    %v393 = vld [vmem:[#allocation2 + $0x870] sm:$0xff]
    %v394 = vld [vmem:[#allocation2 + $0x878] sm:$0xff]
    %v395 = vld [vmem:[#allocation2 + $0x880] sm:$0xff]
    %v396 = vld [vmem:[#allocation2 + $0x888] sm:$0xff]
    %v397 = vld [vmem:[#allocation2 + $0x890] sm:$0xff]
    %v398 = vld [vmem:[#allocation2 + $0x898] sm:$0xff]
    %v399 = vld [vmem:[#allocation2 + $0x8a0] sm:$0xff]
    %v400 = vld [vmem:[#allocation2 + $0x8a8] sm:$0xff]
    %v401 = vld [vmem:[#allocation2 + $0x8b0] sm:$0xff]
    %v402 = vld [vmem:[#allocation2 + $0x8b8] sm:$0xff]
    %v403 = vld [vmem:[#allocation2 + $0x8c0] sm:$0xff]
    %v404 = vld [vmem:[#allocation2 + $0x8c8] sm:$0xff]
    %v405 = vld [vmem:[#allocation2 + $0x8d0] sm:$0xff]
    %v406 = vld [vmem:[#allocation2 + $0x8d8] sm:$0xff]
    %v407 = vld [vmem:[#allocation2 + $0x8e0] sm:$0xff]
    %v408 = vld [vmem:[#allocation2 + $0x8e8] sm:$0xff]
    %v409 = vld [vmem:[#allocation2 + $0x8f0] sm:$0xff]
    %v410 = vld [vmem:[#allocation2 + $0x8f8] sm:$0xff]
    %v411 = vld [vmem:[#allocation2 + $0x900] sm:$0xff]
    %v412 = vld [vmem:[#allocation2 + $0x908] sm:$0xff]
    %v413 = vld [vmem:[#allocation2 + $0x910] sm:$0xff]
    %v414 = vld [vmem:[#allocation2 + $0x918] sm:$0xff]
    %v415 = vld [vmem:[#allocation2 + $0x920] sm:$0xff]
    %v416 = vld [vmem:[#allocation2 + $0x928] sm:$0xff]
    %v417 = vld [vmem:[#allocation4] sm:$0x3]
    %v419 = vlaneseq
    %v420 = vshrl.u32 %v419, 7
    %v421 = vsub.s32 0, %v420
    %v422 = vrot.slane %v417, %v421
    %v423 = vlaneseq
    %v424 = vshrl.u32 %v423, 7
    %v425 = vsub.s32 1, %v424
    %v426 = vrot.slane %v417, %v425
    %v449 = vunpack.c.l.b16 %v103
    %v450 = vunpack.c.h.b16 %v103
    %v451 = vunpack.c.l.b16 %v104
    %v452 = vunpack.c.h.b16 %v104
    %v453 = vunpack.c.l.b16 %v105
    %v454 = vunpack.c.h.b16 %v105
    %v455 = vunpack.c.l.b16 %v106
    %v456 = vunpack.c.h.b16 %v106
    %v457 = vunpack.c.l.b16 %v107
    %v458 = vunpack.c.h.b16 %v107
    %v459 = vunpack.c.l.b16 %v108
    %v460 = vunpack.c.h.b16 %v108
    %v461 = vunpack.c.l.b16 %v109
    %v462 = vunpack.c.h.b16 %v109
    %v463 = vunpack.c.l.b16 %v110
    %v464 = vunpack.c.h.b16 %v110
    %v465 = vunpack.c.l.b16 %v111
    %v466 = vunpack.c.h.b16 %v111
    %v467 = vunpack.c.l.b16 %v112
    %v468 = vunpack.c.l.b16 %v113
    %v469 = vunpack.c.h.b16 %v113
    %v470 = vunpack.c.l.b16 %v114
    %v471 = vunpack.c.h.b16 %v114
    %v472 = vunpack.c.l.b16 %v115
    %v473 = vunpack.c.h.b16 %v115
    %v474 = vunpack.c.l.b16 %v116
    %v475 = vunpack.c.h.b16 %v116
    %v476 = vunpack.c.l.b16 %v117
    %v477 = vunpack.c.h.b16 %v117
    %v478 = vunpack.c.l.b16 %v118
    %v479 = vunpack.c.h.b16 %v118
    %v480 = vunpack.c.l.b16 %v119
    %v481 = vunpack.c.h.b16 %v119
    %v482 = vunpack.c.l.b16 %v120
    %v483 = vunpack.c.h.b16 %v120
    %v484 = vunpack.c.l.b16 %v121
    %v485 = vunpack.c.h.b16 %v121
    %v486 = vunpack.c.l.b16 %v122
    %v487 = vpack.c.b16 %v468, %v449
    %v488 = vpack.c.b16 %v469, %v450
    %v489 = vpack.c.b16 %v470, %v451
    %v490 = vpack.c.b16 %v471, %v452
    %v491 = vpack.c.b16 %v472, %v453
    %v492 = vpack.c.b16 %v473, %v454
    %v493 = vpack.c.b16 %v474, %v455
    %v494 = vpack.c.b16 %v475, %v456
    %v495 = vpack.c.b16 %v476, %v457
    %v496 = vpack.c.b16 %v477, %v458
    %v497 = vpack.c.b16 %v478, %v459
    %v498 = vpack.c.b16 %v479, %v460
    %v499 = vpack.c.b16 %v480, %v461
    %v500 = vpack.c.b16 %v481, %v462
    %v501 = vpack.c.b16 %v482, %v463
    %v502 = vpack.c.b16 %v483, %v464
    %v503 = vpack.c.b16 %v484, %v465
    %v504 = vpack.c.b16 %v485, %v466
    %v505 = vpack.c.b16 %v486, %v467
    %v818 = vunpack.c.l.b16 %v123
    %v819 = vunpack.c.h.b16 %v123
    %v820 = vunpack.c.l.b16 %v124
    %v821 = vunpack.c.h.b16 %v124
    %v822 = vunpack.c.l.b16 %v125
    %v823 = vunpack.c.h.b16 %v125
    %v824 = vunpack.c.l.b16 %v126
    %v825 = vunpack.c.h.b16 %v126
    %v826 = vunpack.c.l.b16 %v127
    %v827 = vunpack.c.h.b16 %v127
    %v828 = vunpack.c.l.b16 %v128
    %v829 = vunpack.c.h.b16 %v128
    %v830 = vunpack.c.l.b16 %v129
    %v831 = vunpack.c.h.b16 %v129
    %v832 = vunpack.c.l.b16 %v130
    %v833 = vunpack.c.h.b16 %v130
    %v834 = vunpack.c.l.b16 %v131
    %v835 = vunpack.c.h.b16 %v131
    %v836 = vunpack.c.l.b16 %v132
    %v837 = vunpack.c.h.b16 %v132
    %v838 = vunpack.c.l.b16 %v133
    %v839 = vunpack.c.h.b16 %v133
    %v840 = vunpack.c.l.b16 %v134
    %v841 = vunpack.c.h.b16 %v134
    %v842 = vunpack.c.l.b16 %v135
    %v843 = vunpack.c.h.b16 %v135
    %v844 = vunpack.c.l.b16 %v136
    %v845 = vunpack.c.h.b16 %v136
    %v846 = vunpack.c.l.b16 %v137
    %v847 = vunpack.c.h.b16 %v137
    %v848 = vunpack.c.l.b16 %v138
    %v849 = vunpack.c.h.b16 %v138
    %v850 = vunpack.c.l.b16 %v139
    %v851 = vunpack.c.h.b16 %v139
    %v852 = vunpack.c.l.b16 %v140
    %v853 = vunpack.c.h.b16 %v140
    %v854 = vunpack.c.l.b16 %v141
    %v855 = vunpack.c.h.b16 %v141
    %v856 = vunpack.c.l.b16 %v142
    %v857 = vunpack.c.h.b16 %v142
    %v858 = vunpack.c.l.b16 %v143
    %v859 = vunpack.c.h.b16 %v143
    %v860 = vunpack.c.l.b16 %v144
    %v861 = vunpack.c.h.b16 %v144
    %v862 = vunpack.c.l.b16 %v145
    %v863 = vunpack.c.h.b16 %v145
    %v864 = vunpack.c.l.b16 %v146
    %v865 = vunpack.c.h.b16 %v146
    %v866 = vunpack.c.l.b16 %v147
    %v867 = vunpack.c.h.b16 %v147
    %v868 = vunpack.c.l.b16 %v148
    %v869 = vunpack.c.h.b16 %v148
    %v870 = vunpack.c.l.b16 %v149
    %v871 = vunpack.c.h.b16 %v149
    %v872 = vunpack.c.l.b16 %v150
    %v873 = vunpack.c.h.b16 %v150
    %v874 = vunpack.c.l.b16 %v151
    %v875 = vunpack.c.h.b16 %v151
    %v876 = vunpack.c.l.b16 %v152
    %v877 = vunpack.c.h.b16 %v152
    %v878 = vunpack.c.l.b16 %v153
    %v879 = vunpack.c.h.b16 %v153
    %v880 = vunpack.c.l.b16 %v154
    %v881 = vunpack.c.h.b16 %v154
    %v882 = vunpack.c.l.b16 %v155
    %v883 = vunpack.c.h.b16 %v155
    %v884 = vunpack.c.l.b16 %v156
    %v885 = vunpack.c.h.b16 %v156
    %v886 = vunpack.c.l.b16 %v157
    %v887 = vunpack.c.h.b16 %v157
    %v888 = vunpack.c.l.b16 %v158
    %v889 = vunpack.c.h.b16 %v158
    %v890 = vunpack.c.l.b16 %v159
    %v891 = vunpack.c.h.b16 %v159
    %v892 = vunpack.c.l.b16 %v160
    %v893 = vunpack.c.h.b16 %v160
    %v894 = vunpack.c.l.b16 %v161
    %v895 = vunpack.c.h.b16 %v161
    %v896 = vunpack.c.l.b16 %v162
    %v897 = vunpack.c.h.b16 %v162
    %v898 = vunpack.c.l.b16 %v163
    %v899 = vunpack.c.h.b16 %v163
    %v900 = vunpack.c.l.b16 %v164
    %v901 = vunpack.c.h.b16 %v164
    %v902 = vunpack.c.l.b16 %v165
    %v903 = vunpack.c.h.b16 %v165
    %v904 = vunpack.c.l.b16 %v166
    %v905 = vunpack.c.h.b16 %v166
    %v906 = vunpack.c.l.b16 %v167
    %v907 = vunpack.c.h.b16 %v167
    %v908 = vunpack.c.l.b16 %v168
    %v909 = vunpack.c.h.b16 %v168
    %v910 = vunpack.c.l.b16 %v169
    %v911 = vunpack.c.h.b16 %v169
    %v912 = vunpack.c.l.b16 %v170
    %v913 = vunpack.c.h.b16 %v170
    %v914 = vunpack.c.l.b16 %v171
    %v915 = vunpack.c.h.b16 %v171
    %v916 = vunpack.c.l.b16 %v172
    %v917 = vunpack.c.h.b16 %v172
    %v918 = vunpack.c.l.b16 %v173
    %v919 = vunpack.c.h.b16 %v173
    %v920 = vunpack.c.l.b16 %v174
    %v921 = vunpack.c.h.b16 %v174
    %v922 = vunpack.c.l.b16 %v175
    %v923 = vunpack.c.h.b16 %v175
    %v924 = vunpack.c.l.b16 %v176
    %v925 = vunpack.c.h.b16 %v176
    %v926 = vunpack.c.l.b16 %v177
    %v927 = vunpack.c.h.b16 %v177
    %v928 = vunpack.c.l.b16 %v178
    %v929 = vunpack.c.h.b16 %v178
    %v930 = vunpack.c.l.b16 %v179
    %v931 = vunpack.c.h.b16 %v179
    %v932 = vunpack.c.l.b16 %v180
    %v933 = vunpack.c.h.b16 %v180
    %v934 = vunpack.c.l.b16 %v181
    %v935 = vunpack.c.h.b16 %v181
    %v936 = vunpack.c.l.b16 %v182
    %v937 = vunpack.c.h.b16 %v182
    %v938 = vunpack.c.l.b16 %v183
    %v939 = vunpack.c.h.b16 %v183
    %v940 = vunpack.c.l.b16 %v184
    %v941 = vunpack.c.h.b16 %v184
    %v942 = vunpack.c.l.b16 %v185
    %v943 = vunpack.c.h.b16 %v185
    %v944 = vunpack.c.l.b16 %v186
    %v945 = vunpack.c.h.b16 %v186
    %v946 = vunpack.c.l.b16 %v187
    %v947 = vunpack.c.h.b16 %v187
    %v948 = vunpack.c.l.b16 %v188
    %v949 = vunpack.c.h.b16 %v188
    %v950 = vunpack.c.l.b16 %v189
    %v951 = vunpack.c.h.b16 %v189
    %v952 = vunpack.c.l.b16 %v190
    %v953 = vunpack.c.h.b16 %v190
    %v954 = vunpack.c.l.b16 %v191
    %v955 = vunpack.c.h.b16 %v191
    %v956 = vunpack.c.l.b16 %v192
    %v957 = vunpack.c.h.b16 %v192
    %v958 = vunpack.c.l.b16 %v193
    %v959 = vunpack.c.h.b16 %v193
    %v960 = vunpack.c.l.b16 %v194
    %v961 = vunpack.c.h.b16 %v194
    %v962 = vunpack.c.l.b16 %v195
    %v963 = vunpack.c.h.b16 %v195
    %v964 = vunpack.c.l.b16 %v196
    %v965 = vunpack.c.h.b16 %v196
    %v966 = vunpack.c.l.b16 %v197
    %v967 = vunpack.c.h.b16 %v197
    %v968 = vunpack.c.l.b16 %v198
    %v969 = vunpack.c.h.b16 %v198
    %v970 = vunpack.c.l.b16 %v199
    %v971 = vunpack.c.h.b16 %v199
    %v972 = vunpack.c.l.b16 %v200
    %v973 = vunpack.c.h.b16 %v200
    %v974 = vunpack.c.l.b16 %v201
    %v975 = vunpack.c.h.b16 %v201
    %v976 = vunpack.c.l.b16 %v202
    %v977 = vunpack.c.h.b16 %v202
    %v978 = vunpack.c.l.b16 %v203
    %v979 = vunpack.c.h.b16 %v203
    %v980 = vunpack.c.l.b16 %v204
    %v981 = vunpack.c.h.b16 %v204
    %v982 = vunpack.c.l.b16 %v205
    %v983 = vunpack.c.h.b16 %v205
    %v984 = vunpack.c.l.b16 %v206
    %v985 = vunpack.c.h.b16 %v206
    %v986 = vunpack.c.l.b16 %v207
    %v987 = vunpack.c.h.b16 %v207
    %v988 = vunpack.c.l.b16 %v208
    %v989 = vunpack.c.h.b16 %v208
    %v990 = vunpack.c.l.b16 %v209
    %v991 = vunpack.c.h.b16 %v209
    %v992 = vunpack.c.l.b16 %v210
    %v993 = vunpack.c.h.b16 %v210
    %v994 = vunpack.c.l.b16 %v211
    %v995 = vunpack.c.h.b16 %v211
    %v996 = vunpack.c.l.b16 %v212
    %v997 = vunpack.c.h.b16 %v212
    %v998 = vunpack.c.l.b16 %v213
    %v999 = vunpack.c.h.b16 %v213
    %v1000 = vunpack.c.l.b16 %v214
    %v1001 = vunpack.c.h.b16 %v214
    %v1002 = vunpack.c.l.b16 %v215
    %v1003 = vunpack.c.h.b16 %v215
    %v1004 = vunpack.c.l.b16 %v216
    %v1005 = vunpack.c.h.b16 %v216
    %v1006 = vunpack.c.l.b16 %v217
    %v1007 = vunpack.c.h.b16 %v217
    %v1008 = vunpack.c.l.b16 %v218
    %v1009 = vunpack.c.h.b16 %v218
    %v1010 = vunpack.c.l.b16 %v219
    %v1011 = vunpack.c.h.b16 %v219
    %v1012 = vunpack.c.l.b16 %v220
    %v1013 = vunpack.c.h.b16 %v220
    %v1014 = vunpack.c.l.b16 %v221
    %v1015 = vunpack.c.h.b16 %v221
    %v1016 = vunpack.c.l.b16 %v222
    %v1017 = vunpack.c.h.b16 %v222
    %v1018 = vunpack.c.l.b16 %v223
    %v1019 = vunpack.c.h.b16 %v223
    %v1020 = vunpack.c.l.b16 %v224
    %v1021 = vunpack.c.h.b16 %v224
    %v1022 = vunpack.c.l.b16 %v225
    %v1023 = vunpack.c.h.b16 %v225
    %v1024 = vunpack.c.l.b16 %v226
    %v1025 = vunpack.c.h.b16 %v226
    %v1026 = vunpack.c.l.b16 %v227
    %v1027 = vunpack.c.h.b16 %v227
    %v1028 = vunpack.c.l.b16 %v228
    %v1029 = vunpack.c.h.b16 %v228
    %v1030 = vunpack.c.l.b16 %v229
    %v1031 = vunpack.c.h.b16 %v229
    %v1032 = vunpack.c.l.b16 %v230
    %v1033 = vunpack.c.h.b16 %v230
    %v1034 = vunpack.c.l.b16 %v231
    %v1035 = vunpack.c.h.b16 %v231
    %v1036 = vunpack.c.l.b16 %v232
    %v1037 = vunpack.c.h.b16 %v232
    %v1038 = vunpack.c.l.b16 %v233
    %v1039 = vunpack.c.h.b16 %v233
    %v1040 = vunpack.c.l.b16 %v234
    %v1041 = vunpack.c.h.b16 %v234
    %v1042 = vunpack.c.l.b16 %v235
    %v1043 = vunpack.c.h.b16 %v235
    %v1044 = vunpack.c.l.b16 %v236
    %v1045 = vunpack.c.h.b16 %v236
    %v1046 = vunpack.c.l.b16 %v237
    %v1047 = vunpack.c.h.b16 %v237
    %v1048 = vunpack.c.l.b16 %v238
    %v1049 = vunpack.c.h.b16 %v238
    %v1050 = vunpack.c.l.b16 %v239
    %v1051 = vunpack.c.h.b16 %v239
    %v1052 = vunpack.c.l.b16 %v240
    %v1053 = vunpack.c.h.b16 %v240
    %v1054 = vunpack.c.l.b16 %v241
    %v1055 = vunpack.c.h.b16 %v241
    %v1056 = vunpack.c.l.b16 %v242
    %v1057 = vunpack.c.h.b16 %v242
    %v1058 = vunpack.c.l.b16 %v243
    %v1059 = vunpack.c.h.b16 %v243
    %v1060 = vunpack.c.l.b16 %v244
    %v1061 = vunpack.c.h.b16 %v244
    %v1062 = vunpack.c.l.b16 %v245
    %v1063 = vunpack.c.h.b16 %v245
    %v1064 = vunpack.c.l.b16 %v246
    %v1065 = vunpack.c.h.b16 %v246
    %v1066 = vunpack.c.l.b16 %v247
    %v1067 = vunpack.c.h.b16 %v247
    %v1068 = vunpack.c.l.b16 %v248
    %v1069 = vunpack.c.h.b16 %v248
    %v1070 = vunpack.c.l.b16 %v249
    %v1071 = vunpack.c.h.b16 %v249
    %v1072 = vunpack.c.l.b16 %v250
    %v1073 = vunpack.c.h.b16 %v250
    %v1074 = vunpack.c.l.b16 %v251
    %v1075 = vunpack.c.h.b16 %v251
    %v1076 = vunpack.c.l.b16 %v252
    %v1077 = vunpack.c.h.b16 %v252
    %v1078 = vunpack.c.l.b16 %v253
    %v1079 = vunpack.c.h.b16 %v253
    %v1080 = vunpack.c.l.b16 %v254
    %v1081 = vunpack.c.h.b16 %v254
    %v1082 = vunpack.c.l.b16 %v255
    %v1083 = vunpack.c.h.b16 %v255
    %v1084 = vunpack.c.l.b16 %v256
    %v1085 = vunpack.c.h.b16 %v256
    %v1086 = vunpack.c.l.b16 %v257
    %v1087 = vunpack.c.h.b16 %v257
    %v1088 = vunpack.c.l.b16 %v258
    %v1089 = vunpack.c.h.b16 %v258
    %v1090 = vunpack.c.l.b16 %v259
    %v1091 = vunpack.c.h.b16 %v259
    %v1092 = vunpack.c.l.b16 %v260
    %v1093 = vunpack.c.h.b16 %v260
    %v1094 = vunpack.c.l.b16 %v261
    %v1095 = vunpack.c.h.b16 %v261
    %v1096 = vunpack.c.l.b16 %v262
    %v1097 = vunpack.c.h.b16 %v262
    %v1098 = vunpack.c.l.b16 %v263
    %v1099 = vunpack.c.h.b16 %v263
    %v1100 = vunpack.c.l.b16 %v264
    %v1101 = vunpack.c.h.b16 %v264
    %v1102 = vunpack.c.l.b16 %v265
    %v1103 = vunpack.c.h.b16 %v265
    %v1104 = vunpack.c.l.b16 %v266
    %v1105 = vunpack.c.h.b16 %v266
    %v1106 = vunpack.c.l.b16 %v267
    %v1107 = vunpack.c.h.b16 %v267
    %v1108 = vunpack.c.l.b16 %v268
    %v1109 = vunpack.c.h.b16 %v268
    %v1110 = vunpack.c.l.b16 %v269
    %v1111 = vunpack.c.h.b16 %v269
    %v1112 = vunpack.c.l.b16 %v270
    %v1113 = vunpack.c.h.b16 %v270
    %v1114 = vunpack.c.l.b16 %v271
    %v1115 = vunpack.c.h.b16 %v271
    %v1116 = vunpack.c.l.b16 %v272
    %v1117 = vunpack.c.h.b16 %v272
    %v1118 = vunpack.c.l.b16 %v273
    %v1119 = vunpack.c.h.b16 %v273
    %v1120 = vunpack.c.l.b16 %v274
    %v1121 = vunpack.c.h.b16 %v274
    %v1122 = vunpack.c.l.b16 %v275
    %v1123 = vunpack.c.h.b16 %v275
    %v1124 = vunpack.c.l.b16 %v276
    %v1125 = vunpack.c.h.b16 %v276
    %v1126 = vunpack.c.l.b16 %v277
    %v1127 = vunpack.c.h.b16 %v277
    %v1128 = vunpack.c.l.b16 %v278
    %v1129 = vunpack.c.h.b16 %v278
    %v1130 = vunpack.c.l.b16 %v279
    %v1131 = vunpack.c.h.b16 %v279
    %v1132 = vunpack.c.l.b16 %v280
    %v1133 = vunpack.c.h.b16 %v280
    %v1134 = vunpack.c.l.b16 %v281
    %v1135 = vunpack.c.h.b16 %v281
    %v1136 = vunpack.c.l.b16 %v282
    %v1137 = vunpack.c.h.b16 %v282
    %v1138 = vunpack.c.l.b16 %v283
    %v1139 = vunpack.c.h.b16 %v283
    %v1140 = vunpack.c.l.b16 %v284
    %v1141 = vunpack.c.h.b16 %v284
    %v1142 = vunpack.c.l.b16 %v285
    %v1143 = vunpack.c.h.b16 %v285
    %v1144 = vunpack.c.l.b16 %v286
    %v1145 = vunpack.c.h.b16 %v286
    %v1146 = vunpack.c.l.b16 %v287
    %v1147 = vunpack.c.h.b16 %v287
    %v1148 = vunpack.c.l.b16 %v288
    %v1149 = vunpack.c.h.b16 %v288
    %v1150 = vunpack.c.l.b16 %v289
    %v1151 = vunpack.c.h.b16 %v289
    %v1152 = vunpack.c.l.b16 %v290
    %v1153 = vunpack.c.h.b16 %v290
    %v1154 = vunpack.c.l.b16 %v291
    %v1155 = vunpack.c.h.b16 %v291
    %v1156 = vunpack.c.l.b16 %v292
    %v1157 = vunpack.c.h.b16 %v292
    %v1158 = vunpack.c.l.b16 %v293
    %v1159 = vunpack.c.h.b16 %v293
    %v1160 = vunpack.c.l.b16 %v294
    %v1161 = vunpack.c.h.b16 %v294
    %v1162 = vunpack.c.l.b16 %v295
    %v1163 = vunpack.c.h.b16 %v295
    %v1164 = vunpack.c.l.b16 %v296
    %v1165 = vunpack.c.h.b16 %v296
    %v1166 = vunpack.c.l.b16 %v297
    %v1167 = vunpack.c.h.b16 %v297
    %v1168 = vunpack.c.l.b16 %v298
    %v1169 = vunpack.c.h.b16 %v298
    %v1170 = vunpack.c.l.b16 %v299
    %v1171 = vunpack.c.h.b16 %v299
    %v1172 = vunpack.c.l.b16 %v300
    %v1173 = vunpack.c.h.b16 %v300
    %v1174 = vunpack.c.l.b16 %v301
    %v1175 = vunpack.c.h.b16 %v301
    %v1176 = vunpack.c.l.b16 %v302
    %v1177 = vunpack.c.h.b16 %v302
    %v1178 = vunpack.c.l.b16 %v303
    %v1179 = vunpack.c.h.b16 %v303
    %v1180 = vunpack.c.l.b16 %v304
    %v1181 = vunpack.c.h.b16 %v304
    %v1182 = vunpack.c.l.b16 %v305
    %v1183 = vunpack.c.h.b16 %v305
    %v1184 = vunpack.c.l.b16 %v306
    %v1185 = vunpack.c.h.b16 %v306
    %v1186 = vunpack.c.l.b16 %v307
    %v1187 = vunpack.c.h.b16 %v307
    %v1188 = vunpack.c.l.b16 %v308
    %v1189 = vunpack.c.h.b16 %v308
    %v1190 = vunpack.c.l.b16 %v309
    %v1191 = vunpack.c.h.b16 %v309
    %v1192 = vunpack.c.l.b16 %v310
    %v1193 = vunpack.c.h.b16 %v310
    %v1194 = vunpack.c.l.b16 %v311
    %v1195 = vunpack.c.h.b16 %v311
    %v1196 = vunpack.c.l.b16 %v312
    %v1197 = vunpack.c.h.b16 %v312
    %v1198 = vunpack.c.l.b16 %v313
    %v1199 = vunpack.c.h.b16 %v313
    %v1200 = vunpack.c.l.b16 %v314
    %v1201 = vunpack.c.h.b16 %v314
    %v1202 = vunpack.c.l.b16 %v315
    %v1203 = vunpack.c.h.b16 %v315
    %v1204 = vunpack.c.l.b16 %v316
    %v1205 = vunpack.c.h.b16 %v316
    %v1206 = vunpack.c.l.b16 %v317
    %v1207 = vunpack.c.h.b16 %v317
    %v1208 = vunpack.c.l.b16 %v318
    %v1209 = vunpack.c.h.b16 %v318
    %v1210 = vunpack.c.l.b16 %v319
    %v1211 = vunpack.c.h.b16 %v319
    %v1212 = vunpack.c.l.b16 %v320
    %v1213 = vunpack.c.h.b16 %v320
    %v1214 = vunpack.c.l.b16 %v321
    %v1215 = vunpack.c.h.b16 %v321
    %v1216 = vunpack.c.l.b16 %v322
    %v1217 = vunpack.c.h.b16 %v322
    %v1218 = vunpack.c.l.b16 %v323
    %v1219 = vunpack.c.h.b16 %v323
    %v1220 = vunpack.c.l.b16 %v324
    %v1221 = vunpack.c.h.b16 %v324
    %v1222 = vunpack.c.l.b16 %v325
    %v1223 = vunpack.c.h.b16 %v325
    %v1224 = vunpack.c.l.b16 %v326
    %v1225 = vunpack.c.h.b16 %v326
    %v1226 = vunpack.c.l.b16 %v327
    %v1227 = vunpack.c.h.b16 %v327
    %v1228 = vunpack.c.l.b16 %v328
    %v1229 = vunpack.c.h.b16 %v328
    %v1230 = vunpack.c.l.b16 %v329
    %v1231 = vunpack.c.h.b16 %v329
    %v1232 = vunpack.c.l.b16 %v330
    %v1233 = vunpack.c.h.b16 %v330
    %v1234 = vunpack.c.l.b16 %v331
    %v1235 = vunpack.c.h.b16 %v331
    %v1236 = vunpack.c.l.b16 %v332
    %v1237 = vunpack.c.h.b16 %v332
    %v1238 = vunpack.c.l.b16 %v333
    %v1239 = vunpack.c.h.b16 %v333
    %v1240 = vunpack.c.l.b16 %v334
    %v1241 = vunpack.c.h.b16 %v334
    %v1242 = vunpack.c.l.b16 %v335
    %v1243 = vunpack.c.h.b16 %v335
    %v1244 = vunpack.c.l.b16 %v336
    %v1245 = vunpack.c.h.b16 %v336
    %v1246 = vunpack.c.l.b16 %v337
    %v1247 = vunpack.c.h.b16 %v337
    %v1248 = vunpack.c.l.b16 %v338
    %v1249 = vunpack.c.h.b16 %v338
    %v1250 = vunpack.c.l.b16 %v339
    %v1251 = vunpack.c.h.b16 %v339
    %v1252 = vunpack.c.l.b16 %v340
    %v1253 = vunpack.c.h.b16 %v340
    %v1254 = vunpack.c.l.b16 %v341
    %v1255 = vunpack.c.h.b16 %v341
    %v1256 = vunpack.c.l.b16 %v342
    %v1257 = vunpack.c.h.b16 %v342
    %v1258 = vunpack.c.l.b16 %v343
    %v1259 = vunpack.c.h.b16 %v343
    %v1260 = vunpack.c.l.b16 %v344
    %v1261 = vunpack.c.h.b16 %v344
    %v1262 = vunpack.c.l.b16 %v345
    %v1263 = vunpack.c.h.b16 %v345
    %v1264 = vunpack.c.l.b16 %v346
    %v1265 = vunpack.c.h.b16 %v346
    %v1266 = vunpack.c.l.b16 %v347
    %v1267 = vunpack.c.h.b16 %v347
    %v1268 = vunpack.c.l.b16 %v348
    %v1269 = vunpack.c.h.b16 %v348
    %v1270 = vunpack.c.l.b16 %v349
    %v1271 = vunpack.c.h.b16 %v349
    %v1272 = vunpack.c.l.b16 %v350
    %v1273 = vunpack.c.h.b16 %v350
    %v1274 = vunpack.c.l.b16 %v351
    %v1275 = vunpack.c.h.b16 %v351
    %v1276 = vunpack.c.l.b16 %v352
    %v1277 = vunpack.c.h.b16 %v352
    %v1278 = vunpack.c.l.b16 %v353
    %v1279 = vunpack.c.h.b16 %v353
    %v1280 = vunpack.c.l.b16 %v354
    %v1281 = vunpack.c.h.b16 %v354
    %v1282 = vunpack.c.l.b16 %v355
    %v1283 = vunpack.c.h.b16 %v355
    %v1284 = vunpack.c.l.b16 %v356
    %v1285 = vunpack.c.h.b16 %v356
    %v1286 = vunpack.c.l.b16 %v357
    %v1287 = vunpack.c.h.b16 %v357
    %v1288 = vunpack.c.l.b16 %v358
    %v1289 = vunpack.c.h.b16 %v358
    %v1290 = vunpack.c.l.b16 %v359
    %v1291 = vunpack.c.h.b16 %v359
    %v1292 = vunpack.c.l.b16 %v360
    %v1293 = vunpack.c.h.b16 %v360
    %v1294 = vunpack.c.l.b16 %v361
    %v1295 = vunpack.c.h.b16 %v361
    %v1296 = vunpack.c.l.b16 %v362
    %v1297 = vunpack.c.h.b16 %v362
    %v1298 = vunpack.c.l.b16 %v363
    %v1299 = vunpack.c.h.b16 %v363
    %v1300 = vunpack.c.l.b16 %v364
    %v1301 = vunpack.c.h.b16 %v364
    %v1302 = vunpack.c.l.b16 %v365
    %v1303 = vunpack.c.h.b16 %v365
    %v1304 = vunpack.c.l.b16 %v366
    %v1305 = vunpack.c.h.b16 %v366
    %v1306 = vunpack.c.l.b16 %v367
    %v1307 = vunpack.c.h.b16 %v367
    %v1308 = vunpack.c.l.b16 %v368
    %v1309 = vunpack.c.h.b16 %v368
    %v1310 = vunpack.c.l.b16 %v369
    %v1311 = vunpack.c.h.b16 %v369
    %v1312 = vunpack.c.l.b16 %v370
    %v1313 = vunpack.c.h.b16 %v370
    %v1314 = vunpack.c.l.b16 %v371
    %v1315 = vunpack.c.h.b16 %v371
    %v1316 = vunpack.c.l.b16 %v372
    %v1317 = vunpack.c.h.b16 %v372
    %v1318 = vunpack.c.l.b16 %v373
    %v1319 = vunpack.c.h.b16 %v373
    %v1320 = vunpack.c.l.b16 %v374
    %v1321 = vunpack.c.h.b16 %v374
    %v1322 = vunpack.c.l.b16 %v375
    %v1323 = vunpack.c.h.b16 %v375
    %v1324 = vunpack.c.l.b16 %v376
    %v1325 = vunpack.c.h.b16 %v376
    %v1326 = vunpack.c.l.b16 %v377
    %v1327 = vunpack.c.h.b16 %v377
    %v1328 = vunpack.c.l.b16 %v378
    %v1329 = vunpack.c.h.b16 %v378
    %v1330 = vunpack.c.l.b16 %v379
    %v1331 = vunpack.c.h.b16 %v379
    %v1332 = vunpack.c.l.b16 %v380
    %v1333 = vunpack.c.h.b16 %v380
    %v1334 = vunpack.c.l.b16 %v381
    %v1335 = vunpack.c.h.b16 %v381
    %v1336 = vunpack.c.l.b16 %v382
    %v1337 = vunpack.c.h.b16 %v382
    %v1338 = vunpack.c.l.b16 %v383
    %v1339 = vunpack.c.h.b16 %v383
    %v1340 = vunpack.c.l.b16 %v384
    %v1341 = vunpack.c.h.b16 %v384
    %v1342 = vunpack.c.l.b16 %v385
    %v1343 = vunpack.c.h.b16 %v385
    %v1344 = vunpack.c.l.b16 %v386
    %v1345 = vunpack.c.h.b16 %v386
    %v1346 = vunpack.c.l.b16 %v387
    %v1347 = vunpack.c.h.b16 %v387
    %v1348 = vunpack.c.l.b16 %v388
    %v1349 = vunpack.c.h.b16 %v388
    %v1350 = vunpack.c.l.b16 %v389
    %v1351 = vunpack.c.h.b16 %v389
    %v1352 = vunpack.c.l.b16 %v390
    %v1353 = vunpack.c.h.b16 %v390
    %v1354 = vunpack.c.l.b16 %v391
    %v1355 = vunpack.c.h.b16 %v391
    %v1356 = vunpack.c.l.b16 %v392
    %v1357 = vunpack.c.h.b16 %v392
    %v1358 = vunpack.c.l.b16 %v393
    %v1359 = vunpack.c.h.b16 %v393
    %v1360 = vunpack.c.l.b16 %v394
    %v1361 = vunpack.c.h.b16 %v394
    %v1362 = vunpack.c.l.b16 %v395
    %v1363 = vunpack.c.h.b16 %v395
    %v1364 = vunpack.c.l.b16 %v396
    %v1365 = vunpack.c.h.b16 %v396
    %v1366 = vunpack.c.l.b16 %v397
    %v1367 = vunpack.c.h.b16 %v397
    %v1368 = vunpack.c.l.b16 %v398
    %v1369 = vunpack.c.h.b16 %v398
    %v1370 = vunpack.c.l.b16 %v399
    %v1371 = vunpack.c.h.b16 %v399
    %v1372 = vunpack.c.l.b16 %v400
    %v1373 = vunpack.c.h.b16 %v400
    %v1374 = vunpack.c.l.b16 %v401
    %v1375 = vunpack.c.h.b16 %v401
    %v1376 = vunpack.c.l.b16 %v402
    %v1377 = vunpack.c.h.b16 %v402
    %v1378 = vunpack.c.l.b16 %v403
    %v1379 = vunpack.c.h.b16 %v403
    %v1380 = vunpack.c.l.b16 %v404
    %v1381 = vunpack.c.h.b16 %v404
    %v1382 = vunpack.c.l.b16 %v405
    %v1383 = vunpack.c.h.b16 %v405
    %v1384 = vunpack.c.l.b16 %v406
    %v1385 = vunpack.c.h.b16 %v406
    %v1386 = vunpack.c.l.b16 %v407
    %v1387 = vunpack.c.h.b16 %v407
    %v1388 = vunpack.c.l.b16 %v408
    %v1389 = vunpack.c.h.b16 %v408
    %v1390 = vunpack.c.l.b16 %v409
    %v1391 = vunpack.c.h.b16 %v409
    %v1392 = vunpack.c.l.b16 %v410
    %v1393 = vunpack.c.h.b16 %v410
    %v1394 = vunpack.c.l.b16 %v411
    %v1395 = vunpack.c.h.b16 %v411
    %v1396 = vunpack.c.l.b16 %v412
    %v1397 = vunpack.c.h.b16 %v412
    %v1398 = vunpack.c.l.b16 %v413
    %v1399 = vunpack.c.h.b16 %v413
    %v1400 = vunpack.c.l.b16 %v414
    %v1401 = vunpack.c.h.b16 %v414
    %v1402 = vunpack.c.l.b16 %v415
    %v1403 = vunpack.c.h.b16 %v415
    %v1404 = vunpack.c.l.b16 %v416
    %v1405 = vunpack.c.h.b16 %v416
    %v1406 = vpack.c.b16 %v820, %v818
    %v1407 = vpack.c.b16 %v821, %v819
    %v1408 = vpack.c.b16 %v824, %v822
    %v1409 = vpack.c.b16 %v825, %v823
    %v1410 = vpack.c.b16 %v828, %v826
    %v1411 = vpack.c.b16 %v829, %v827
    %v1412 = vpack.c.b16 %v832, %v830
    %v1413 = vpack.c.b16 %v833, %v831
    %v1414 = vpack.c.b16 %v836, %v834
    %v1415 = vpack.c.b16 %v837, %v835
    %v1416 = vpack.c.b16 %v840, %v838
    %v1417 = vpack.c.b16 %v841, %v839
    %v1418 = vpack.c.b16 %v844, %v842
    %v1419 = vpack.c.b16 %v845, %v843
    %v1420 = vpack.c.b16 %v848, %v846
    %v1421 = vpack.c.b16 %v849, %v847
    %v1422 = vpack.c.b16 %v852, %v850
    %v1423 = vpack.c.b16 %v853, %v851
    %v1424 = vpack.c.b16 %v856, %v854
    %v1425 = vpack.c.b16 %v857, %v855
    %v1426 = vpack.c.b16 %v860, %v858
    %v1427 = vpack.c.b16 %v861, %v859
    %v1428 = vpack.c.b16 %v864, %v862
    %v1429 = vpack.c.b16 %v865, %v863
    %v1430 = vpack.c.b16 %v868, %v866
    %v1431 = vpack.c.b16 %v869, %v867
    %v1432 = vpack.c.b16 %v872, %v870
    %v1433 = vpack.c.b16 %v873, %v871
    %v1434 = vpack.c.b16 %v876, %v874
    %v1435 = vpack.c.b16 %v877, %v875
    %v1436 = vpack.c.b16 %v880, %v878
    %v1437 = vpack.c.b16 %v881, %v879
    %v1438 = vpack.c.b16 %v884, %v882
    %v1439 = vpack.c.b16 %v885, %v883
    %v1440 = vpack.c.b16 %v888, %v886
    %v1441 = vpack.c.b16 %v889, %v887
    %v1442 = vpack.c.b16 %v892, %v890
    %v1443 = vpack.c.b16 %v893, %v891
    %v1444 = vpack.c.b16 %v896, %v894
    %v1445 = vpack.c.b16 %v897, %v895
    %v1446 = vpack.c.b16 %v900, %v898
    %v1447 = vpack.c.b16 %v901, %v899
    %v1448 = vpack.c.b16 %v904, %v902
    %v1449 = vpack.c.b16 %v905, %v903
    %v1450 = vpack.c.b16 %v908, %v906
    %v1451 = vpack.c.b16 %v909, %v907
    %v1452 = vpack.c.b16 %v912, %v910
    %v1453 = vpack.c.b16 %v913, %v911
    %v1454 = vpack.c.b16 %v916, %v914
    %v1455 = vpack.c.b16 %v917, %v915
    %v1456 = vpack.c.b16 %v920, %v918
    %v1457 = vpack.c.b16 %v921, %v919
    %v1458 = vpack.c.b16 %v924, %v922
    %v1459 = vpack.c.b16 %v925, %v923
    %v1460 = vpack.c.b16 %v928, %v926
    %v1461 = vpack.c.b16 %v929, %v927
    %v1462 = vpack.c.b16 %v932, %v930
    %v1463 = vpack.c.b16 %v933, %v931
    %v1464 = vpack.c.b16 %v936, %v934
    %v1465 = vpack.c.b16 %v937, %v935
    %v1466 = vpack.c.b16 %v940, %v938
    %v1467 = vpack.c.b16 %v941, %v939
    %v1468 = vpack.c.b16 %v944, %v942
    %v1469 = vpack.c.b16 %v945, %v943
    %v1470 = vpack.c.b16 %v948, %v946
    %v1471 = vpack.c.b16 %v949, %v947
    %v1472 = vpack.c.b16 %v952, %v950
    %v1473 = vpack.c.b16 %v953, %v951
    %v1474 = vpack.c.b16 %v956, %v954
    %v1475 = vpack.c.b16 %v957, %v955
    %v1476 = vpack.c.b16 %v960, %v958
    %v1477 = vpack.c.b16 %v961, %v959
    %v1478 = vpack.c.b16 %v964, %v962
    %v1479 = vpack.c.b16 %v965, %v963
    %v1480 = vpack.c.b16 %v968, %v966
    %v1481 = vpack.c.b16 %v969, %v967
    %v1482 = vpack.c.b16 %v972, %v970
    %v1483 = vpack.c.b16 %v973, %v971
    %v1484 = vpack.c.b16 %v976, %v974
    %v1485 = vpack.c.b16 %v977, %v975
    %v1486 = vpack.c.b16 %v980, %v978
    %v1487 = vpack.c.b16 %v981, %v979
    %v1488 = vpack.c.b16 %v984, %v982
    %v1489 = vpack.c.b16 %v985, %v983
    %v1490 = vpack.c.b16 %v988, %v986
    %v1491 = vpack.c.b16 %v989, %v987
    %v1492 = vpack.c.b16 %v992, %v990
    %v1493 = vpack.c.b16 %v993, %v991
    %v1494 = vpack.c.b16 %v996, %v994
    %v1495 = vpack.c.b16 %v997, %v995
    %v1496 = vpack.c.b16 %v1000, %v998
    %v1497 = vpack.c.b16 %v1001, %v999
    %v1498 = vpack.c.b16 %v1004, %v1002
    %v1499 = vpack.c.b16 %v1005, %v1003
    %v1500 = vpack.c.b16 %v1008, %v1006
    %v1501 = vpack.c.b16 %v1009, %v1007
    %v1502 = vpack.c.b16 %v1012, %v1010
    %v1503 = vpack.c.b16 %v1013, %v1011
    %v1504 = vpack.c.b16 %v1016, %v1014
    %v1505 = vpack.c.b16 %v1017, %v1015
    %v1506 = vpack.c.b16 %v1020, %v1018
    %v1507 = vpack.c.b16 %v1021, %v1019
    %v1508 = vpack.c.b16 %v1024, %v1022
    %v1509 = vpack.c.b16 %v1025, %v1023
    %v1510 = vpack.c.b16 %v1028, %v1026
    %v1511 = vpack.c.b16 %v1029, %v1027
    %v1512 = vpack.c.b16 %v1032, %v1030
    %v1513 = vpack.c.b16 %v1033, %v1031
    %v1514 = vpack.c.b16 %v1036, %v1034
    %v1515 = vpack.c.b16 %v1037, %v1035
    %v1516 = vpack.c.b16 %v1040, %v1038
    %v1517 = vpack.c.b16 %v1041, %v1039
    %v1518 = vpack.c.b16 %v1044, %v1042
    %v1519 = vpack.c.b16 %v1045, %v1043
    %v1520 = vpack.c.b16 %v1048, %v1046
    %v1521 = vpack.c.b16 %v1049, %v1047
    %v1522 = vpack.c.b16 %v1052, %v1050
    %v1523 = vpack.c.b16 %v1053, %v1051
    %v1524 = vpack.c.b16 %v1056, %v1054
    %v1525 = vpack.c.b16 %v1057, %v1055
    %v1526 = vpack.c.b16 %v1060, %v1058
    %v1527 = vpack.c.b16 %v1061, %v1059
    %v1528 = vpack.c.b16 %v1064, %v1062
    %v1529 = vpack.c.b16 %v1065, %v1063
    %v1530 = vpack.c.b16 %v1068, %v1066
    %v1531 = vpack.c.b16 %v1069, %v1067
    %v1532 = vpack.c.b16 %v1072, %v1070
    %v1533 = vpack.c.b16 %v1073, %v1071
    %v1534 = vpack.c.b16 %v1076, %v1074
    %v1535 = vpack.c.b16 %v1077, %v1075
    %v1536 = vpack.c.b16 %v1080, %v1078
    %v1537 = vpack.c.b16 %v1081, %v1079
    %v1538 = vpack.c.b16 %v1084, %v1082
    %v1539 = vpack.c.b16 %v1085, %v1083
    %v1540 = vpack.c.b16 %v1088, %v1086
    %v1541 = vpack.c.b16 %v1089, %v1087
    %v1542 = vpack.c.b16 %v1092, %v1090
    %v1543 = vpack.c.b16 %v1093, %v1091
    %v1544 = vpack.c.b16 %v1096, %v1094
    %v1545 = vpack.c.b16 %v1097, %v1095
    %v1546 = vpack.c.b16 %v1100, %v1098
    %v1547 = vpack.c.b16 %v1101, %v1099
    %v1548 = vpack.c.b16 %v1104, %v1102
    %v1549 = vpack.c.b16 %v1105, %v1103
    %v1550 = vpack.c.b16 %v1108, %v1106
    %v1551 = vpack.c.b16 %v1109, %v1107
    %v1552 = vpack.c.b16 %v1112, %v1110
    %v1553 = vpack.c.b16 %v1113, %v1111
    %v1554 = vpack.c.b16 %v1116, %v1114
    %v1555 = vpack.c.b16 %v1117, %v1115
    %v1556 = vpack.c.b16 %v1120, %v1118
    %v1557 = vpack.c.b16 %v1121, %v1119
    %v1558 = vpack.c.b16 %v1124, %v1122
    %v1559 = vpack.c.b16 %v1125, %v1123
    %v1560 = vpack.c.b16 %v1128, %v1126
    %v1561 = vpack.c.b16 %v1129, %v1127
    %v1562 = vpack.c.b16 %v1132, %v1130
    %v1563 = vpack.c.b16 %v1133, %v1131
    %v1564 = vpack.c.b16 %v1136, %v1134
    %v1565 = vpack.c.b16 %v1137, %v1135
    %v1566 = vpack.c.b16 %v1140, %v1138
    %v1567 = vpack.c.b16 %v1141, %v1139
    %v1568 = vpack.c.b16 %v1144, %v1142
    %v1569 = vpack.c.b16 %v1145, %v1143
    %v1570 = vpack.c.b16 %v1148, %v1146
    %v1571 = vpack.c.b16 %v1149, %v1147
    %v1572 = vpack.c.b16 %v1152, %v1150
    %v1573 = vpack.c.b16 %v1153, %v1151
    %v1574 = vpack.c.b16 %v1156, %v1154
    %v1575 = vpack.c.b16 %v1157, %v1155
    %v1576 = vpack.c.b16 %v1160, %v1158
    %v1577 = vpack.c.b16 %v1161, %v1159
    %v1578 = vpack.c.b16 %v1164, %v1162
    %v1579 = vpack.c.b16 %v1165, %v1163
    %v1580 = vpack.c.b16 %v1168, %v1166
    %v1581 = vpack.c.b16 %v1169, %v1167
    %v1582 = vpack.c.b16 %v1172, %v1170
    %v1583 = vpack.c.b16 %v1173, %v1171
    %v1584 = vpack.c.b16 %v1176, %v1174
    %v1585 = vpack.c.b16 %v1177, %v1175
    %v1586 = vpack.c.b16 %v1180, %v1178
    %v1587 = vpack.c.b16 %v1181, %v1179
    %v1588 = vpack.c.b16 %v1184, %v1182
    %v1589 = vpack.c.b16 %v1185, %v1183
    %v1590 = vpack.c.b16 %v1188, %v1186
    %v1591 = vpack.c.b16 %v1189, %v1187
    %v1592 = vpack.c.b16 %v1192, %v1190
    %v1593 = vpack.c.b16 %v1193, %v1191
    %v1594 = vpack.c.b16 %v1196, %v1194
    %v1595 = vpack.c.b16 %v1197, %v1195
    %v1596 = vpack.c.b16 %v1200, %v1198
    %v1597 = vpack.c.b16 %v1201, %v1199
    %v1598 = vpack.c.b16 %v1204, %v1202
    %v1599 = vpack.c.b16 %v1205, %v1203
    %v1600 = vpack.c.b16 %v1208, %v1206
    %v1601 = vpack.c.b16 %v1209, %v1207
    %v1602 = vpack.c.b16 %v1212, %v1210
    %v1603 = vpack.c.b16 %v1213, %v1211
    %v1604 = vpack.c.b16 %v1216, %v1214
    %v1605 = vpack.c.b16 %v1217, %v1215
    %v1606 = vpack.c.b16 %v1220, %v1218
    %v1607 = vpack.c.b16 %v1221, %v1219
    %v1608 = vpack.c.b16 %v1224, %v1222
    %v1609 = vpack.c.b16 %v1225, %v1223
    %v1610 = vpack.c.b16 %v1228, %v1226
    %v1611 = vpack.c.b16 %v1229, %v1227
    %v1612 = vpack.c.b16 %v1232, %v1230
    %v1613 = vpack.c.b16 %v1233, %v1231
    %v1614 = vpack.c.b16 %v1236, %v1234
    %v1615 = vpack.c.b16 %v1237, %v1235
    %v1616 = vpack.c.b16 %v1240, %v1238
    %v1617 = vpack.c.b16 %v1241, %v1239
    %v1618 = vpack.c.b16 %v1244, %v1242
    %v1619 = vpack.c.b16 %v1245, %v1243
    %v1620 = vpack.c.b16 %v1248, %v1246
    %v1621 = vpack.c.b16 %v1249, %v1247
    %v1622 = vpack.c.b16 %v1252, %v1250
    %v1623 = vpack.c.b16 %v1253, %v1251
    %v1624 = vpack.c.b16 %v1256, %v1254
    %v1625 = vpack.c.b16 %v1257, %v1255
    %v1626 = vpack.c.b16 %v1260, %v1258
    %v1627 = vpack.c.b16 %v1261, %v1259
    %v1628 = vpack.c.b16 %v1264, %v1262
    %v1629 = vpack.c.b16 %v1265, %v1263
    %v1630 = vpack.c.b16 %v1268, %v1266
    %v1631 = vpack.c.b16 %v1269, %v1267
    %v1632 = vpack.c.b16 %v1272, %v1270
    %v1633 = vpack.c.b16 %v1273, %v1271
    %v1634 = vpack.c.b16 %v1276, %v1274
    %v1635 = vpack.c.b16 %v1277, %v1275
    %v1636 = vpack.c.b16 %v1280, %v1278
    %v1637 = vpack.c.b16 %v1281, %v1279
    %v1638 = vpack.c.b16 %v1284, %v1282
    %v1639 = vpack.c.b16 %v1285, %v1283
    %v1640 = vpack.c.b16 %v1288, %v1286
    %v1641 = vpack.c.b16 %v1289, %v1287
    %v1642 = vpack.c.b16 %v1292, %v1290
    %v1643 = vpack.c.b16 %v1293, %v1291
    %v1644 = vpack.c.b16 %v1296, %v1294
    %v1645 = vpack.c.b16 %v1297, %v1295
    %v1646 = vpack.c.b16 %v1300, %v1298
    %v1647 = vpack.c.b16 %v1301, %v1299
    %v1648 = vpack.c.b16 %v1304, %v1302
    %v1649 = vpack.c.b16 %v1305, %v1303
    %v1650 = vpack.c.b16 %v1308, %v1306
    %v1651 = vpack.c.b16 %v1309, %v1307
    %v1652 = vpack.c.b16 %v1312, %v1310
    %v1653 = vpack.c.b16 %v1313, %v1311
    %v1654 = vpack.c.b16 %v1316, %v1314
    %v1655 = vpack.c.b16 %v1317, %v1315
    %v1656 = vpack.c.b16 %v1320, %v1318
    %v1657 = vpack.c.b16 %v1321, %v1319
    %v1658 = vpack.c.b16 %v1324, %v1322
    %v1659 = vpack.c.b16 %v1325, %v1323
    %v1660 = vpack.c.b16 %v1328, %v1326
    %v1661 = vpack.c.b16 %v1329, %v1327
    %v1662 = vpack.c.b16 %v1332, %v1330
    %v1663 = vpack.c.b16 %v1333, %v1331
    %v1664 = vpack.c.b16 %v1336, %v1334
    %v1665 = vpack.c.b16 %v1337, %v1335
    %v1666 = vpack.c.b16 %v1340, %v1338
    %v1667 = vpack.c.b16 %v1341, %v1339
    %v1668 = vpack.c.b16 %v1344, %v1342
    %v1669 = vpack.c.b16 %v1345, %v1343
    %v1670 = vpack.c.b16 %v1348, %v1346
    %v1671 = vpack.c.b16 %v1349, %v1347
    %v1672 = vpack.c.b16 %v1352, %v1350
    %v1673 = vpack.c.b16 %v1353, %v1351
    %v1674 = vpack.c.b16 %v1356, %v1354
    %v1675 = vpack.c.b16 %v1357, %v1355
    %v1676 = vpack.c.b16 %v1360, %v1358
    %v1677 = vpack.c.b16 %v1361, %v1359
    %v1678 = vpack.c.b16 %v1364, %v1362
    %v1679 = vpack.c.b16 %v1365, %v1363
    %v1680 = vpack.c.b16 %v1368, %v1366
    %v1681 = vpack.c.b16 %v1369, %v1367
    %v1682 = vpack.c.b16 %v1372, %v1370
    %v1683 = vpack.c.b16 %v1373, %v1371
    %v1684 = vpack.c.b16 %v1376, %v1374
    %v1685 = vpack.c.b16 %v1377, %v1375
    %v1686 = vpack.c.b16 %v1380, %v1378
    %v1687 = vpack.c.b16 %v1381, %v1379
    %v1688 = vpack.c.b16 %v1384, %v1382
    %v1689 = vpack.c.b16 %v1385, %v1383
    %v1690 = vpack.c.b16 %v1388, %v1386
    %v1691 = vpack.c.b16 %v1389, %v1387
    %v1692 = vpack.c.b16 %v1392, %v1390
    %v1693 = vpack.c.b16 %v1393, %v1391
    %v1694 = vpack.c.b16 %v1396, %v1394
    %v1695 = vpack.c.b16 %v1397, %v1395
    %v1696 = vpack.c.b16 %v1400, %v1398
    %v1697 = vpack.c.b16 %v1401, %v1399
    %v1698 = vpack.c.b16 %v1404, %v1402
    %v1699 = vpack.c.b16 %v1405, %v1403
    %vm1994 = vcmask 392192
    %v1996 = vsel %vm1994, %v505, 0
    %1998 = vmatprep.subr.bf16.mxu0 %v1407
    %1999 = vmatpush1.bf16.msra.mxu0 %v1406
    %2000 = vmatprep.subr.bf16.mxu0 %v1409
    %2001 = vmatpush1.bf16.msra.mxu0 %v1408
    %2002 = vmatprep.subr.bf16.mxu0 %v1411
    %2003 = vmatpush1.bf16.msra.mxu0 %v1410
    %2004 = vmatprep.subr.bf16.mxu0 %v1413
    %2005 = vmatpush1.bf16.msra.mxu0 %v1412
    %2006 = vmatprep.subr.bf16.mxu0 %v1415
    %2007 = vmatpush1.bf16.msra.mxu0 %v1414
    %2008 = vmatprep.subr.bf16.mxu0 %v1417
    %2009 = vmatpush1.bf16.msra.mxu0 %v1416
    %2010 = vmatprep.subr.bf16.mxu0 %v1419
    %2011 = vmatpush1.bf16.msra.mxu0 %v1418
    %2012 = vmatprep.subr.bf16.mxu0 %v1421
    %2013 = vmatpush1.bf16.msra.mxu0 %v1420
    %2014 = vmatprep.subr.bf16.mxu0 %v1423
    %2015 = vmatpush1.bf16.msra.mxu0 %v1422
    %2016 = vmatprep.subr.bf16.mxu0 %v1425
    %2017 = vmatpush1.bf16.msra.mxu0 %v1424
    %2018 = vmatprep.subr.bf16.mxu0 %v1427
    %2019 = vmatpush1.bf16.msra.mxu0 %v1426
    %2020 = vmatprep.subr.bf16.mxu0 %v1429
    %2021 = vmatpush1.bf16.msra.mxu0 %v1428
    %2022 = vmatprep.subr.bf16.mxu0 %v1431
    %2023 = vmatpush1.bf16.msra.mxu0 %v1430
    %2024 = vmatprep.subr.bf16.mxu0 %v1433
    %2025 = vmatpush1.bf16.msra.mxu0 %v1432
    %2026 = vmatprep.subr.bf16.mxu0 %v1435
    %2027 = vmatpush1.bf16.msra.mxu0 %v1434
    %2028 = vmatprep.subr.bf16.mxu0 %v1437
    %2029 = vmatpush1.bf16.msra.mxu0 %v1436
    %2030 = vmatprep.mubr.bf16.mxu0 %v488
    %2031 = vmatmul.mubr.bf16.gmra.mrb[0].mxu0 %v487
    %v2032 = vpop.f32.mrb[0].mxu0
    %v2033 = vadd.f32 %v422, %v2032
    %v2034 = vpop.f32.mrb[0].mxu0
    %v2035 = vadd.f32 %v426, %v2034
    %v2036 = vpop.f32.mrb[0].mxu0
    %v2037 = vadd.f32 %v422, %v2036
    %v2038 = vpop.f32.mrb[0].mxu0
    %v2039 = vadd.f32 %v426, %v2038
    %2040 = vdwg.mxu0
    %2041 = vmatprep.subr.bf16.mxu0 %v1439
    %2042 = vmatpush1.bf16.msra.mxu0 %v1438
    %2043 = vmatprep.subr.bf16.mxu0 %v1441
    %2044 = vmatpush1.bf16.msra.mxu0 %v1440
    %2045 = vmatprep.subr.bf16.mxu0 %v1443
    %2046 = vmatpush1.bf16.msra.mxu0 %v1442
    %2047 = vmatprep.subr.bf16.mxu0 %v1445
    %2048 = vmatpush1.bf16.msra.mxu0 %v1444
    %2049 = vmatprep.subr.bf16.mxu0 %v1447
    %2050 = vmatpush1.bf16.msra.mxu0 %v1446
    %2051 = vmatprep.subr.bf16.mxu0 %v1449
    %2052 = vmatpush1.bf16.msra.mxu0 %v1448
    %2053 = vmatprep.subr.bf16.mxu0 %v1451
    %2054 = vmatpush1.bf16.msra.mxu0 %v1450
    %2055 = vmatprep.subr.bf16.mxu0 %v1453
    %2056 = vmatpush1.bf16.msra.mxu0 %v1452
    %2057 = vmatprep.subr.bf16.mxu0 %v1455
    %2058 = vmatpush1.bf16.msra.mxu0 %v1454
    %2059 = vmatprep.subr.bf16.mxu0 %v1457
    %2060 = vmatpush1.bf16.msra.mxu0 %v1456
    %2061 = vmatprep.subr.bf16.mxu0 %v1459
    %2062 = vmatpush1.bf16.msra.mxu0 %v1458
    %2063 = vmatprep.subr.bf16.mxu0 %v1461
    %2064 = vmatpush1.bf16.msra.mxu0 %v1460
    %2065 = vmatprep.subr.bf16.mxu0 %v1463
    %2066 = vmatpush1.bf16.msra.mxu0 %v1462
    %2067 = vmatprep.subr.bf16.mxu0 %v1465
    %2068 = vmatpush1.bf16.msra.mxu0 %v1464
    %2069 = vmatprep.subr.bf16.mxu0 %v1467
    %2070 = vmatpush1.bf16.msra.mxu0 %v1466
    %2071 = vmatprep.subr.bf16.mxu0 %v1469
    %2072 = vmatpush1.bf16.msra.mxu0 %v1468
    %2073 = vmatprep.mubr.bf16.mxu0 %v490
    %2074 = vmatmul.mubr.bf16.gmra.mrb[0].mxu0 %v489
    %v2075 = vpop.f32.mrb[0].mxu0
    %v2076 = vadd.f32 %v2033, %v2075
    %v2077 = vpop.f32.mrb[0].mxu0
    %v2078 = vadd.f32 %v2035, %v2077
    %v2079 = vpop.f32.mrb[0].mxu0
    %v2080 = vadd.f32 %v2037, %v2079
    %v2081 = vpop.f32.mrb[0].mxu0
    %v2082 = vadd.f32 %v2039, %v2081
    %2083 = vdwg.mxu0
    %2084 = vmatprep.subr.bf16.mxu0 %v1471
    %2085 = vmatpush1.bf16.msra.mxu0 %v1470
    %2086 = vmatprep.subr.bf16.mxu0 %v1473
    %2087 = vmatpush1.bf16.msra.mxu0 %v1472
    %2088 = vmatprep.subr.bf16.mxu0 %v1475
    %2089 = vmatpush1.bf16.msra.mxu0 %v1474
    %2090 = vmatprep.subr.bf16.mxu0 %v1477
    %2091 = vmatpush1.bf16.msra.mxu0 %v1476
    %2092 = vmatprep.subr.bf16.mxu0 %v1479
    %2093 = vmatpush1.bf16.msra.mxu0 %v1478
    %2094 = vmatprep.subr.bf16.mxu0 %v1481
    %2095 = vmatpush1.bf16.msra.mxu0 %v1480
    %2096 = vmatprep.subr.bf16.mxu0 %v1483
    %2097 = vmatpush1.bf16.msra.mxu0 %v1482
    %2098 = vmatprep.subr.bf16.mxu0 %v1485
    %2099 = vmatpush1.bf16.msra.mxu0 %v1484
    %2100 = vmatprep.subr.bf16.mxu0 %v1487
    %2101 = vmatpush1.bf16.msra.mxu0 %v1486
    %2102 = vmatprep.subr.bf16.mxu0 %v1489
    %2103 = vmatpush1.bf16.msra.mxu0 %v1488
    %2104 = vmatprep.subr.bf16.mxu0 %v1491
    %2105 = vmatpush1.bf16.msra.mxu0 %v1490
    %2106 = vmatprep.subr.bf16.mxu0 %v1493
    %2107 = vmatpush1.bf16.msra.mxu0 %v1492
    %2108 = vmatprep.subr.bf16.mxu0 %v1495
    %2109 = vmatpush1.bf16.msra.mxu0 %v1494
    %2110 = vmatprep.subr.bf16.mxu0 %v1497
    %2111 = vmatpush1.bf16.msra.mxu0 %v1496
    %2112 = vmatprep.subr.bf16.mxu0 %v1499
    %2113 = vmatpush1.bf16.msra.mxu0 %v1498
    %2114 = vmatprep.subr.bf16.mxu0 %v1501
    %2115 = vmatpush1.bf16.msra.mxu0 %v1500
    %2116 = vmatprep.mubr.bf16.mxu0 %v492
    %2117 = vmatmul.mubr.bf16.gmra.mrb[0].mxu0 %v491
    %v2118 = vpop.f32.mrb[0].mxu0
    %v2119 = vadd.f32 %v2076, %v2118
    %v2120 = vpop.f32.mrb[0].mxu0
    %v2121 = vadd.f32 %v2078, %v2120
    %v2122 = vpop.f32.mrb[0].mxu0
    %v2123 = vadd.f32 %v2080, %v2122
    %v2124 = vpop.f32.mrb[0].mxu0
    %v2125 = vadd.f32 %v2082, %v2124
    %2126 = vdwg.mxu0
    %2127 = vmatprep.subr.bf16.mxu0 %v1503
    %2128 = vmatpush1.bf16.msra.mxu0 %v1502
    %2129 = vmatprep.subr.bf16.mxu0 %v1505
    %2130 = vmatpush1.bf16.msra.mxu0 %v1504
    %2131 = vmatprep.subr.bf16.mxu0 %v1507
    %2132 = vmatpush1.bf16.msra.mxu0 %v1506
    %2133 = vmatprep.subr.bf16.mxu0 %v1509
    %2134 = vmatpush1.bf16.msra.mxu0 %v1508
    %2135 = vmatprep.subr.bf16.mxu0 %v1511
    %2136 = vmatpush1.bf16.msra.mxu0 %v1510
    %2137 = vmatprep.subr.bf16.mxu0 %v1513
    %2138 = vmatpush1.bf16.msra.mxu0 %v1512
    %2139 = vmatprep.subr.bf16.mxu0 %v1515
    %2140 = vmatpush1.bf16.msra.mxu0 %v1514
    %2141 = vmatprep.subr.bf16.mxu0 %v1517
    %2142 = vmatpush1.bf16.msra.mxu0 %v1516
    %2143 = vmatprep.subr.bf16.mxu0 %v1519
    %2144 = vmatpush1.bf16.msra.mxu0 %v1518
    %2145 = vmatprep.subr.bf16.mxu0 %v1521
    %2146 = vmatpush1.bf16.msra.mxu0 %v1520
    %2147 = vmatprep.subr.bf16.mxu0 %v1523
    %2148 = vmatpush1.bf16.msra.mxu0 %v1522
    %2149 = vmatprep.subr.bf16.mxu0 %v1525
    %2150 = vmatpush1.bf16.msra.mxu0 %v1524
    %2151 = vmatprep.subr.bf16.mxu0 %v1527
    %2152 = vmatpush1.bf16.msra.mxu0 %v1526
    %2153 = vmatprep.subr.bf16.mxu0 %v1529
    %2154 = vmatpush1.bf16.msra.mxu0 %v1528
    %2155 = vmatprep.subr.bf16.mxu0 %v1531
    %2156 = vmatpush1.bf16.msra.mxu0 %v1530
    %2157 = vmatprep.subr.bf16.mxu0 %v1533
    %2158 = vmatpush1.bf16.msra.mxu0 %v1532
    %2159 = vmatprep.mubr.bf16.mxu0 %v494
    %2160 = vmatmul.mubr.bf16.gmra.mrb[0].mxu0 %v493
    %v2161 = vpop.f32.mrb[0].mxu0
    %v2162 = vadd.f32 %v2119, %v2161
    %v2163 = vpop.f32.mrb[0].mxu0
    %v2164 = vadd.f32 %v2121, %v2163
    %v2165 = vpop.f32.mrb[0].mxu0
    %v2166 = vadd.f32 %v2123, %v2165
    %v2167 = vpop.f32.mrb[0].mxu0
    %v2168 = vadd.f32 %v2125, %v2167
    %2169 = vdwg.mxu0
    %2170 = vmatprep.subr.bf16.mxu0 %v1535
    %2171 = vmatpush1.bf16.msra.mxu0 %v1534
    %2172 = vmatprep.subr.bf16.mxu0 %v1537
    %2173 = vmatpush1.bf16.msra.mxu0 %v1536
    %2174 = vmatprep.subr.bf16.mxu0 %v1539
    %2175 = vmatpush1.bf16.msra.mxu0 %v1538
    %2176 = vmatprep.subr.bf16.mxu0 %v1541
    %2177 = vmatpush1.bf16.msra.mxu0 %v1540
    %2178 = vmatprep.subr.bf16.mxu0 %v1543
    %2179 = vmatpush1.bf16.msra.mxu0 %v1542
    %2180 = vmatprep.subr.bf16.mxu0 %v1545
    %2181 = vmatpush1.bf16.msra.mxu0 %v1544
    %2182 = vmatprep.subr.bf16.mxu0 %v1547
    %2183 = vmatpush1.bf16.msra.mxu0 %v1546
    %2184 = vmatprep.subr.bf16.mxu0 %v1549
    %2185 = vmatpush1.bf16.msra.mxu0 %v1548
    %2186 = vmatprep.subr.bf16.mxu0 %v1551
    %2187 = vmatpush1.bf16.msra.mxu0 %v1550
    %2188 = vmatprep.subr.bf16.mxu0 %v1553
    %2189 = vmatpush1.bf16.msra.mxu0 %v1552
    %2190 = vmatprep.subr.bf16.mxu0 %v1555
    %2191 = vmatpush1.bf16.msra.mxu0 %v1554
    %2192 = vmatprep.subr.bf16.mxu0 %v1557
    %2193 = vmatpush1.bf16.msra.mxu0 %v1556
    %2194 = vmatprep.subr.bf16.mxu0 %v1559
    %2195 = vmatpush1.bf16.msra.mxu0 %v1558
    %2196 = vmatprep.subr.bf16.mxu0 %v1561
    %2197 = vmatpush1.bf16.msra.mxu0 %v1560
    %2198 = vmatprep.subr.bf16.mxu0 %v1563
    %2199 = vmatpush1.bf16.msra.mxu0 %v1562
    %2200 = vmatprep.subr.bf16.mxu0 %v1565
    %2201 = vmatpush1.bf16.msra.mxu0 %v1564
    %2202 = vmatprep.mubr.bf16.mxu0 %v496
    %2203 = vmatmul.mubr.bf16.gmra.mrb[0].mxu0 %v495
    %v2204 = vpop.f32.mrb[0].mxu0
    %v2205 = vadd.f32 %v2162, %v2204
    %v2206 = vpop.f32.mrb[0].mxu0
    %v2207 = vadd.f32 %v2164, %v2206
    %v2208 = vpop.f32.mrb[0].mxu0
    %v2209 = vadd.f32 %v2166, %v2208
    %v2210 = vpop.f32.mrb[0].mxu0
    %v2211 = vadd.f32 %v2168, %v2210
    %2212 = vdwg.mxu0
    %2213 = vmatprep.subr.bf16.mxu0 %v1567
    %2214 = vmatpush1.bf16.msra.mxu0 %v1566
    %2215 = vmatprep.subr.bf16.mxu0 %v1569
    %2216 = vmatpush1.bf16.msra.mxu0 %v1568
    %2217 = vmatprep.subr.bf16.mxu0 %v1571
    %2218 = vmatpush1.bf16.msra.mxu0 %v1570
    %2219 = vmatprep.subr.bf16.mxu0 %v1573
    %2220 = vmatpush1.bf16.msra.mxu0 %v1572
    %2221 = vmatprep.subr.bf16.mxu0 %v1575
    %2222 = vmatpush1.bf16.msra.mxu0 %v1574
    %2223 = vmatprep.subr.bf16.mxu0 %v1577
    %2224 = vmatpush1.bf16.msra.mxu0 %v1576
    %2225 = vmatprep.subr.bf16.mxu0 %v1579
    %2226 = vmatpush1.bf16.msra.mxu0 %v1578
    %2227 = vmatprep.subr.bf16.mxu0 %v1581
    %2228 = vmatpush1.bf16.msra.mxu0 %v1580
    %2229 = vmatprep.subr.bf16.mxu0 %v1583
    %2230 = vmatpush1.bf16.msra.mxu0 %v1582
    %2231 = vmatprep.subr.bf16.mxu0 %v1585
    %2232 = vmatpush1.bf16.msra.mxu0 %v1584
    %2233 = vmatprep.subr.bf16.mxu0 %v1587
    %2234 = vmatpush1.bf16.msra.mxu0 %v1586
    %2235 = vmatprep.subr.bf16.mxu0 %v1589
    %2236 = vmatpush1.bf16.msra.mxu0 %v1588
    %2237 = vmatprep.subr.bf16.mxu0 %v1591
    %2238 = vmatpush1.bf16.msra.mxu0 %v1590
    %2239 = vmatprep.subr.bf16.mxu0 %v1593
    %2240 = vmatpush1.bf16.msra.mxu0 %v1592
    %2241 = vmatprep.subr.bf16.mxu0 %v1595
    %2242 = vmatpush1.bf16.msra.mxu0 %v1594
    %2243 = vmatprep.subr.bf16.mxu0 %v1597
    %2244 = vmatpush1.bf16.msra.mxu0 %v1596
    %2245 = vmatprep.mubr.bf16.mxu0 %v498
    %2246 = vmatmul.mubr.bf16.gmra.mrb[0].mxu0 %v497
    %v2247 = vpop.f32.mrb[0].mxu0
    %v2248 = vadd.f32 %v2205, %v2247
    %v2249 = vpop.f32.mrb[0].mxu0
    %v2250 = vadd.f32 %v2207, %v2249
    %v2251 = vpop.f32.mrb[0].mxu0
    %v2252 = vadd.f32 %v2209, %v2251
    %v2253 = vpop.f32.mrb[0].mxu0
    %v2254 = vadd.f32 %v2211, %v2253
    %2255 = vdwg.mxu0
    %2256 = vmatprep.subr.bf16.mxu0 %v1599
    %2257 = vmatpush1.bf16.msra.mxu0 %v1598
    %2258 = vmatprep.subr.bf16.mxu0 %v1601
    %2259 = vmatpush1.bf16.msra.mxu0 %v1600
    %2260 = vmatprep.subr.bf16.mxu0 %v1603
    %2261 = vmatpush1.bf16.msra.mxu0 %v1602
    %2262 = vmatprep.subr.bf16.mxu0 %v1605
    %2263 = vmatpush1.bf16.msra.mxu0 %v1604
    %2264 = vmatprep.subr.bf16.mxu0 %v1607
    %2265 = vmatpush1.bf16.msra.mxu0 %v1606
    %2266 = vmatprep.subr.bf16.mxu0 %v1609
    %2267 = vmatpush1.bf16.msra.mxu0 %v1608
    %2268 = vmatprep.subr.bf16.mxu0 %v1611
    %2269 = vmatpush1.bf16.msra.mxu0 %v1610
    %2270 = vmatprep.subr.bf16.mxu0 %v1613
    %2271 = vmatpush1.bf16.msra.mxu0 %v1612
    %2272 = vmatprep.subr.bf16.mxu0 %v1615
    %2273 = vmatpush1.bf16.msra.mxu0 %v1614
    %2274 = vmatprep.subr.bf16.mxu0 %v1617
    %2275 = vmatpush1.bf16.msra.mxu0 %v1616
    %2276 = vmatprep.subr.bf16.mxu0 %v1619
    %2277 = vmatpush1.bf16.msra.mxu0 %v1618
    %2278 = vmatprep.subr.bf16.mxu0 %v1621
    %2279 = vmatpush1.bf16.msra.mxu0 %v1620
    %2280 = vmatprep.subr.bf16.mxu0 %v1623
    %2281 = vmatpush1.bf16.msra.mxu0 %v1622
    %2282 = vmatprep.subr.bf16.mxu0 %v1625
    %2283 = vmatpush1.bf16.msra.mxu0 %v1624
    %2284 = vmatprep.subr.bf16.mxu0 %v1627
    %2285 = vmatpush1.bf16.msra.mxu0 %v1626
    %2286 = vmatprep.subr.bf16.mxu0 %v1629
    %2287 = vmatpush1.bf16.msra.mxu0 %v1628
    %2288 = vmatprep.mubr.bf16.mxu0 %v500
    %2289 = vmatmul.mubr.bf16.gmra.mrb[0].mxu0 %v499
    %v2290 = vpop.f32.mrb[0].mxu0
    %v2291 = vadd.f32 %v2248, %v2290
    %v2292 = vpop.f32.mrb[0].mxu0
    %v2293 = vadd.f32 %v2250, %v2292
    %v2294 = vpop.f32.mrb[0].mxu0
    %v2295 = vadd.f32 %v2252, %v2294
    %v2296 = vpop.f32.mrb[0].mxu0
    %v2297 = vadd.f32 %v2254, %v2296
    %2298 = vdwg.mxu0
    %2299 = vmatprep.subr.bf16.mxu0 %v1631
    %2300 = vmatpush1.bf16.msra.mxu0 %v1630
    %2301 = vmatprep.subr.bf16.mxu0 %v1633
    %2302 = vmatpush1.bf16.msra.mxu0 %v1632
    %2303 = vmatprep.subr.bf16.mxu0 %v1635
    %2304 = vmatpush1.bf16.msra.mxu0 %v1634
    %2305 = vmatprep.subr.bf16.mxu0 %v1637
    %2306 = vmatpush1.bf16.msra.mxu0 %v1636
    %2307 = vmatprep.subr.bf16.mxu0 %v1639
    %2308 = vmatpush1.bf16.msra.mxu0 %v1638
    %2309 = vmatprep.subr.bf16.mxu0 %v1641
    %2310 = vmatpush1.bf16.msra.mxu0 %v1640
    %2311 = vmatprep.subr.bf16.mxu0 %v1643
    %2312 = vmatpush1.bf16.msra.mxu0 %v1642
    %2313 = vmatprep.subr.bf16.mxu0 %v1645
    %2314 = vmatpush1.bf16.msra.mxu0 %v1644
    %2315 = vmatprep.subr.bf16.mxu0 %v1647
    %2316 = vmatpush1.bf16.msra.mxu0 %v1646
    %2317 = vmatprep.subr.bf16.mxu0 %v1649
    %2318 = vmatpush1.bf16.msra.mxu0 %v1648
    %2319 = vmatprep.subr.bf16.mxu0 %v1651
    %2320 = vmatpush1.bf16.msra.mxu0 %v1650
    %2321 = vmatprep.subr.bf16.mxu0 %v1653
    %2322 = vmatpush1.bf16.msra.mxu0 %v1652
    %2323 = vmatprep.subr.bf16.mxu0 %v1655
    %2324 = vmatpush1.bf16.msra.mxu0 %v1654
    %2325 = vmatprep.subr.bf16.mxu0 %v1657
    %2326 = vmatpush1.bf16.msra.mxu0 %v1656
    %2327 = vmatprep.subr.bf16.mxu0 %v1659
    %2328 = vmatpush1.bf16.msra.mxu0 %v1658
    %2329 = vmatprep.subr.bf16.mxu0 %v1661
    %2330 = vmatpush1.bf16.msra.mxu0 %v1660
    %2331 = vmatprep.mubr.bf16.mxu0 %v502
    %2332 = vmatmul.mubr.bf16.gmra.mrb[0].mxu0 %v501
    %v2333 = vpop.f32.mrb[0].mxu0
    %v2334 = vadd.f32 %v2291, %v2333
    %v2335 = vpop.f32.mrb[0].mxu0
    %v2336 = vadd.f32 %v2293, %v2335
    %v2337 = vpop.f32.mrb[0].mxu0
    %v2338 = vadd.f32 %v2295, %v2337
    %v2339 = vpop.f32.mrb[0].mxu0
    %v2340 = vadd.f32 %v2297, %v2339
    %2341 = vdwg.mxu0
    %2342 = vmatprep.subr.bf16.mxu0 %v1663
    %2343 = vmatpush1.bf16.msra.mxu0 %v1662
    %2344 = vmatprep.subr.bf16.mxu0 %v1665
    %2345 = vmatpush1.bf16.msra.mxu0 %v1664
    %2346 = vmatprep.subr.bf16.mxu0 %v1667
    %2347 = vmatpush1.bf16.msra.mxu0 %v1666
    %2348 = vmatprep.subr.bf16.mxu0 %v1669
    %2349 = vmatpush1.bf16.msra.mxu0 %v1668
    %2350 = vmatprep.subr.bf16.mxu0 %v1671
    %2351 = vmatpush1.bf16.msra.mxu0 %v1670
    %2352 = vmatprep.subr.bf16.mxu0 %v1673
    %2353 = vmatpush1.bf16.msra.mxu0 %v1672
    %2354 = vmatprep.subr.bf16.mxu0 %v1675
    %2355 = vmatpush1.bf16.msra.mxu0 %v1674
    %2356 = vmatprep.subr.bf16.mxu0 %v1677
    %2357 = vmatpush1.bf16.msra.mxu0 %v1676
    %2358 = vmatprep.subr.bf16.mxu0 %v1679
    %2359 = vmatpush1.bf16.msra.mxu0 %v1678
    %2360 = vmatprep.subr.bf16.mxu0 %v1681
    %2361 = vmatpush1.bf16.msra.mxu0 %v1680
    %2362 = vmatprep.subr.bf16.mxu0 %v1683
    %2363 = vmatpush1.bf16.msra.mxu0 %v1682
    %2364 = vmatprep.subr.bf16.mxu0 %v1685
    %2365 = vmatpush1.bf16.msra.mxu0 %v1684
    %2366 = vmatprep.subr.bf16.mxu0 %v1687
    %2367 = vmatpush1.bf16.msra.mxu0 %v1686
    %2368 = vmatprep.subr.bf16.mxu0 %v1689
    %2369 = vmatpush1.bf16.msra.mxu0 %v1688
    %2370 = vmatprep.subr.bf16.mxu0 %v1691
    %2371 = vmatpush1.bf16.msra.mxu0 %v1690
    %2372 = vmatprep.subr.bf16.mxu0 %v1693
    %2373 = vmatpush1.bf16.msra.mxu0 %v1692
    %2374 = vmatprep.mubr.bf16.mxu0 %v504
    %2375 = vmatmul.mubr.bf16.gmra.mrb[0].mxu0 %v503
    %v2376 = vpop.f32.mrb[0].mxu0
    %v2377 = vadd.f32 %v2334, %v2376
    %v2378 = vpop.f32.mrb[0].mxu0
    %v2379 = vadd.f32 %v2336, %v2378
    %v2380 = vpop.f32.mrb[0].mxu0
    %v2381 = vadd.f32 %v2338, %v2380
    %v2382 = vpop.f32.mrb[0].mxu0
    %v2383 = vadd.f32 %v2340, %v2382
    %2384 = vdwg.mxu0
    %2385 = vmatprep.subr.bf16.mxu0 %v1695
    %2386 = vmatpush1.bf16.msra.mxu0 %v1694
    %2387 = vmatprep.subr.bf16.mxu0 %v1697
    %2388 = vmatpush1.bf16.msra.mxu0 %v1696
    %2389 = vmatprep.subr.bf16.mxu0 %v1699
    %2390 = vmatpush1.bf16.msra.mxu0 %v1698
    %2391 = vmatprep.subr.bf16.mxu0 0
    %2392 = vmatpush1.bf16.msra.mxu0 0
    %2393 = vmatprep.subr.bf16.mxu0 0
    %2394 = vmatpush1.bf16.msra.mxu0 0
    %2395 = vmatprep.subr.bf16.mxu0 0
    %2396 = vmatpush1.bf16.msra.mxu0 0
    %2397 = vmatprep.subr.bf16.mxu0 0
    %2398 = vmatpush1.bf16.msra.mxu0 0
    %2399 = vmatprep.subr.bf16.mxu0 0
    %2400 = vmatpush1.bf16.msra.mxu0 0
    %2401 = vmatprep.subr.bf16.mxu0 0
    %2402 = vmatpush1.bf16.msra.mxu0 0
    %2403 = vmatprep.subr.bf16.mxu0 0
    %2404 = vmatpush1.bf16.msra.mxu0 0
    %2405 = vmatprep.subr.bf16.mxu0 0
    %2406 = vmatpush1.bf16.msra.mxu0 0
    %2407 = vmatprep.subr.bf16.mxu0 0
    %2408 = vmatpush1.bf16.msra.mxu0 0
    %2409 = vmatprep.subr.bf16.mxu0 0
    %2410 = vmatpush1.bf16.msra.mxu0 0
    %2411 = vmatprep.subr.bf16.mxu0 0
    %2412 = vmatpush1.bf16.msra.mxu0 0
    %2413 = vmatprep.subr.bf16.mxu0 0
    %2414 = vmatpush1.bf16.msra.mxu0 0
    %2415 = vmatprep.subr.bf16.mxu0 0
    %2416 = vmatpush1.bf16.msra.mxu0 0
    %2417 = vmatprep.mubr.bf16.mxu0 0
    %2418 = vmatmul.mubr.bf16.gmra.mrb[0].mxu0 %v1996
    %v2419 = vpop.f32.mrb[0].mxu0
    %v2420 = vadd.f32 %v2377, %v2419
    %v2421 = vpop.f32.mrb[0].mxu0
    %v2422 = vadd.f32 %v2379, %v2421
    %v2423 = vpop.f32.mrb[0].mxu0
    %v2424 = vadd.f32 %v2381, %v2423
    %v2425 = vpop.f32.mrb[0].mxu0
    %v2426 = vadd.f32 %v2383, %v2425
    %2427 = vdwg.mxu0
    %v2428 = vmax.f32 %v2420, 0.0
    %v2429 = vmax.f32 %v2422, 0.0
    %v2430 = vmax.f32 %v2424, 0.0
    %v2431 = vmax.f32 %v2426, 0.0
    %v2432 = vpack.c.bf16 %v2430, %v2428
    %v2433 = vpack.c.bf16 %v2431, %v2429
    %v2434 = vld [vmem:[#allocation6] sm:$0xf]
    %v2435 = vld [vmem:[#allocation6 + $0x4] sm:$0xf]
    %v2436 = vld [vmem:[#allocation6 + $0x8] sm:$0xf]
    %v2437 = vld [vmem:[#allocation6 + $0xc] sm:$0xf]
    %v2438 = vld [vmem:[#allocation6 + $0x10] sm:$0xf]
    %v2439 = vld [vmem:[#allocation6 + $0x14] sm:$0xf]
    %v2440 = vld [vmem:[#allocation6 + $0x18] sm:$0xf]
    %v2441 = vld [vmem:[#allocation6 + $0x1c] sm:$0xf]
    %v2442 = vld [vmem:[#allocation6 + $0x20] sm:$0xf]
    %v2443 = vld [vmem:[#allocation6 + $0x24] sm:$0xf]
    %v2444 = vld [vmem:[#allocation6 + $0x28] sm:$0xf]
    %v2445 = vld [vmem:[#allocation6 + $0x2c] sm:$0xf]
    %v2446 = vld [vmem:[#allocation6 + $0x30] sm:$0xf]
    %v2447 = vld [vmem:[#allocation6 + $0x34] sm:$0xf]
    %v2448 = vld [vmem:[#allocation6 + $0x38] sm:$0xf]
    %v2449 = vld [vmem:[#allocation6 + $0x3c] sm:$0xf]
    %v2450 = vld [vmem:[#allocation6 + $0x40] sm:$0xf]
    %v2451 = vld [vmem:[#allocation6 + $0x44] sm:$0xf]
    %v2452 = vld [vmem:[#allocation6 + $0x48] sm:$0xf]
    %v2453 = vld [vmem:[#allocation6 + $0x4c] sm:$0xf]
    %v2454 = vld [vmem:[#allocation6 + $0x50] sm:$0xf]
    %v2455 = vld [vmem:[#allocation6 + $0x54] sm:$0xf]
    %v2456 = vld [vmem:[#allocation6 + $0x58] sm:$0xf]
    %v2457 = vld [vmem:[#allocation6 + $0x5c] sm:$0xf]
    %v2458 = vld [vmem:[#allocation6 + $0x60] sm:$0xf]
    %v2459 = vld [vmem:[#allocation6 + $0x64] sm:$0xf]
    %v2460 = vld [vmem:[#allocation6 + $0x68] sm:$0xf]
    %v2461 = vld [vmem:[#allocation6 + $0x6c] sm:$0xf]
    %v2462 = vld [vmem:[#allocation6 + $0x70] sm:$0xf]
    %v2463 = vld [vmem:[#allocation6 + $0x74] sm:$0xf]
    %v2464 = vld [vmem:[#allocation6 + $0x78] sm:$0xf]
    %v2465 = vld [vmem:[#allocation6 + $0x7c] sm:$0xf]
    %v2466 = vld [vmem:[#allocation7] sm:$0x1]
    %v2468 = vlaneseq
    %v2469 = vshrl.u32 %v2468, 7
    %v2470 = vsub.s32 0, %v2469
    %v2471 = vrot.slane %v2466, %v2470
    %v2505 = vunpack.c.l.b16 %v2434
    %v2506 = vunpack.c.l.b16 %v2435
    %v2507 = vunpack.c.l.b16 %v2436
    %v2508 = vunpack.c.l.b16 %v2437
    %v2509 = vunpack.c.l.b16 %v2438
    %v2510 = vunpack.c.l.b16 %v2439
    %v2511 = vunpack.c.l.b16 %v2440
    %v2512 = vunpack.c.l.b16 %v2441
    %v2513 = vunpack.c.l.b16 %v2442
    %v2514 = vunpack.c.l.b16 %v2443
    %v2515 = vunpack.c.l.b16 %v2444
    %v2516 = vunpack.c.l.b16 %v2445
    %v2517 = vunpack.c.l.b16 %v2446
    %v2518 = vunpack.c.l.b16 %v2447
    %v2519 = vunpack.c.l.b16 %v2448
    %v2520 = vunpack.c.l.b16 %v2449
    %v2521 = vunpack.c.l.b16 %v2450
    %v2522 = vunpack.c.l.b16 %v2451
    %v2523 = vunpack.c.l.b16 %v2452
    %v2524 = vunpack.c.l.b16 %v2453
    %v2525 = vunpack.c.l.b16 %v2454
    %v2526 = vunpack.c.l.b16 %v2455
    %v2527 = vunpack.c.l.b16 %v2456
    %v2528 = vunpack.c.l.b16 %v2457
    %v2529 = vunpack.c.l.b16 %v2458
    %v2530 = vunpack.c.l.b16 %v2459
    %v2531 = vunpack.c.l.b16 %v2460
    %v2532 = vunpack.c.l.b16 %v2461
    %v2533 = vunpack.c.l.b16 %v2462
    %v2534 = vunpack.c.l.b16 %v2463
    %v2535 = vunpack.c.l.b16 %v2464
    %v2536 = vunpack.c.l.b16 %v2465
    %v2537 = vpack.c.b16 %v2506, %v2505
    %v2538 = vpack.c.b16 %v2508, %v2507
    %v2539 = vpack.c.b16 %v2510, %v2509
    %v2540 = vpack.c.b16 %v2512, %v2511
    %v2541 = vpack.c.b16 %v2514, %v2513
    %v2542 = vpack.c.b16 %v2516, %v2515
    %v2543 = vpack.c.b16 %v2518, %v2517
    %v2544 = vpack.c.b16 %v2520, %v2519
    %v2545 = vpack.c.b16 %v2522, %v2521
    %v2546 = vpack.c.b16 %v2524, %v2523
    %v2547 = vpack.c.b16 %v2526, %v2525
    %v2548 = vpack.c.b16 %v2528, %v2527
    %v2549 = vpack.c.b16 %v2530, %v2529
    %v2550 = vpack.c.b16 %v2532, %v2531
    %v2551 = vpack.c.b16 %v2534, %v2533
    %v2552 = vpack.c.b16 %v2536, %v2535
    %2569 = vmatprep.subr.bf16.mxu0 0
    %2570 = vmatpush1.bf16.msra.mxu0 %v2537
    %2571 = vmatprep.subr.bf16.mxu0 0
    %2572 = vmatpush1.bf16.msra.mxu0 %v2538
    %2573 = vmatprep.subr.bf16.mxu0 0
    %2574 = vmatpush1.bf16.msra.mxu0 %v2539
    %2575 = vmatprep.subr.bf16.mxu0 0
    %2576 = vmatpush1.bf16.msra.mxu0 %v2540
    %2577 = vmatprep.subr.bf16.mxu0 0
    %2578 = vmatpush1.bf16.msra.mxu0 %v2541
    %2579 = vmatprep.subr.bf16.mxu0 0
    %2580 = vmatpush1.bf16.msra.mxu0 %v2542
    %2581 = vmatprep.subr.bf16.mxu0 0
    %2582 = vmatpush1.bf16.msra.mxu0 %v2543
    %2583 = vmatprep.subr.bf16.mxu0 0
    %2584 = vmatpush1.bf16.msra.mxu0 %v2544
    %2585 = vmatprep.subr.bf16.mxu0 0
    %2586 = vmatpush1.bf16.msra.mxu0 %v2545
    %2587 = vmatprep.subr.bf16.mxu0 0
    %2588 = vmatpush1.bf16.msra.mxu0 %v2546
    %2589 = vmatprep.subr.bf16.mxu0 0
    %2590 = vmatpush1.bf16.msra.mxu0 %v2547
    %2591 = vmatprep.subr.bf16.mxu0 0
    %2592 = vmatpush1.bf16.msra.mxu0 %v2548
    %2593 = vmatprep.subr.bf16.mxu0 0
    %2594 = vmatpush1.bf16.msra.mxu0 %v2549
    %2595 = vmatprep.subr.bf16.mxu0 0
    %2596 = vmatpush1.bf16.msra.mxu0 %v2550
    %2597 = vmatprep.subr.bf16.mxu0 0
    %2598 = vmatpush1.bf16.msra.mxu0 %v2551
    %2599 = vmatprep.subr.bf16.mxu0 0
    %2600 = vmatpush1.bf16.msra.mxu0 %v2552
    %2601 = vmatprep.mubr.bf16.mxu0 %v2433
    %2602 = vmatmul.mubr.bf16.gmra.mrb[0].mxu0 %v2432
    %v2603 = vpop.f32.mrb[0].mxu0
    %v2604 = vadd.f32 %v2471, %v2603
    %v2605 = vpop.f32.mrb[0].mxu0
    %v2606 = vpop.f32.mrb[0].mxu0
    %v2607 = vadd.f32 %v2471, %v2606
    %v2608 = vpop.f32.mrb[0].mxu0
    %2609 = vdwg.mxu0
    %v2610 = vmax.f32 %v2604, 0.0
    %v2611 = vmax.f32 %v2607, 0.0
    %v2612 = vpack.c.bf16 %v2611, %v2610
    %v2613 = vld [vmem:[#allocation9] sm:$0xf]
    %v2614 = vld [vmem:[#allocation9 + $0x4] sm:$0xf]
    %v2615 = vld [vmem:[#allocation9 + $0x8] sm:$0xf]
    %v2616 = vld [vmem:[#allocation9 + $0xc] sm:$0xf]
    %v2617 = vld [vmem:[#allocation9 + $0x10] sm:$0xf]
    %v2618 = vld [vmem:[#allocation9 + $0x14] sm:$0xf]
    %v2619 = vld [vmem:[#allocation9 + $0x18] sm:$0xf]
    %v2620 = vld [vmem:[#allocation9 + $0x1c] sm:$0xf]
    %v2621 = vld [vmem:[#allocation9 + $0x20] sm:$0xf]
    %v2622 = vld [vmem:[#allocation9 + $0x24] sm:$0xf]
    %v2623 = vld [vmem:[#allocation9 + $0x28] sm:$0xf]
    %v2624 = vld [vmem:[#allocation9 + $0x2c] sm:$0xf]
    %v2625 = vld [vmem:[#allocation9 + $0x30] sm:$0xf]
    %v2626 = vld [vmem:[#allocation9 + $0x34] sm:$0xf]
    %v2627 = vld [vmem:[#allocation9 + $0x38] sm:$0xf]
    %v2628 = vld [vmem:[#allocation9 + $0x3c] sm:$0xf]
    %v2629 = vld [vmem:[#allocation10] sm:$0x1]
    %v2631 = vlaneseq
    %v2632 = vshrl.u32 %v2631, 7
    %v2633 = vsub.s32 0, %v2632
    %v2634 = vrot.slane %v2629, %v2633
    %v2652 = vunpack.c.l.b16 %v2613
    %v2653 = vunpack.c.l.b16 %v2614
    %v2654 = vunpack.c.l.b16 %v2615
    %v2655 = vunpack.c.l.b16 %v2616
    %v2656 = vunpack.c.l.b16 %v2617
    %v2657 = vunpack.c.l.b16 %v2618
    %v2658 = vunpack.c.l.b16 %v2619
    %v2659 = vunpack.c.l.b16 %v2620
    %v2660 = vunpack.c.l.b16 %v2621
    %v2661 = vunpack.c.l.b16 %v2622
    %v2662 = vunpack.c.l.b16 %v2623
    %v2663 = vunpack.c.l.b16 %v2624
    %v2664 = vunpack.c.l.b16 %v2625
    %v2665 = vunpack.c.l.b16 %v2626
    %v2666 = vunpack.c.l.b16 %v2627
    %v2667 = vunpack.c.l.b16 %v2628
    %v2668 = vpack.c.b16 %v2653, %v2652
    %v2669 = vpack.c.b16 %v2655, %v2654
    %v2670 = vpack.c.b16 %v2657, %v2656
    %v2671 = vpack.c.b16 %v2659, %v2658
    %v2672 = vpack.c.b16 %v2661, %v2660
    %v2673 = vpack.c.b16 %v2663, %v2662
    %v2674 = vpack.c.b16 %v2665, %v2664
    %v2675 = vpack.c.b16 %v2667, %v2666
    %2684 = vmatprep.subr.bf16.mxu0 0
    %2685 = vmatpush1.bf16.msra.mxu0 %v2668
    %2686 = vmatprep.subr.bf16.mxu0 0
    %2687 = vmatpush1.bf16.msra.mxu0 %v2669
    %2688 = vmatprep.subr.bf16.mxu0 0
    %2689 = vmatpush1.bf16.msra.mxu0 %v2670
    %2690 = vmatprep.subr.bf16.mxu0 0
    %2691 = vmatpush1.bf16.msra.mxu0 %v2671
    %2692 = vmatprep.subr.bf16.mxu0 0
    %2693 = vmatpush1.bf16.msra.mxu0 %v2672
    %2694 = vmatprep.subr.bf16.mxu0 0
    %2695 = vmatpush1.bf16.msra.mxu0 %v2673
    %2696 = vmatprep.subr.bf16.mxu0 0
    %2697 = vmatpush1.bf16.msra.mxu0 %v2674
    %2698 = vmatprep.subr.bf16.mxu0 0
    %2699 = vmatpush1.bf16.msra.mxu0 %v2675
    %2700 = vmatprep.subr.bf16.mxu0 0
    %2701 = vmatpush1.bf16.msra.mxu0 0
    %2702 = vmatprep.subr.bf16.mxu0 0
    %2703 = vmatpush1.bf16.msra.mxu0 0
    %2704 = vmatprep.subr.bf16.mxu0 0
    %2705 = vmatpush1.bf16.msra.mxu0 0
    %2706 = vmatprep.subr.bf16.mxu0 0
    %2707 = vmatpush1.bf16.msra.mxu0 0
    %2708 = vmatprep.subr.bf16.mxu0 0
    %2709 = vmatpush1.bf16.msra.mxu0 0
    %2710 = vmatprep.subr.bf16.mxu0 0
    %2711 = vmatpush1.bf16.msra.mxu0 0
    %2712 = vmatprep.subr.bf16.mxu0 0
    %2713 = vmatpush1.bf16.msra.mxu0 0
    %2714 = vmatprep.subr.bf16.mxu0 0
    %2715 = vmatpush1.bf16.msra.mxu0 0
    %2716 = vmatprep.mubr.bf16.mxu0 0
    %2717 = vmatmul.mubr.bf16.gmra.mrb[0].mxu0 %v2612
    %v2718 = vpop.f32.mrb[0].mxu0
    %v2719 = vadd.f32 %v2634, %v2718
    %v2720 = vpop.f32.mrb[0].mxu0
    %v2721 = vpop.f32.mrb[0].mxu0
    %v2722 = vadd.f32 %v2634, %v2721
    %v2723 = vpop.f32.mrb[0].mxu0
    %2724 = vdwg.mxu0
    %2725 = vst [vmem:[#allocation12] sm:$0xff] %v2719
    %2726 = vst [vmem:[#allocation12 + $0x8] sm:$0xff] %v2722
    // Predicated region
    $region54: #{_triple_mlp_forward.1} parent=1 // pred_check
      _
    $region55: #{_triple_mlp_forward.1} parent=1 // pred_check_branch
      %2728 = sbr.rel (0) target = $region57
    $region56: #{_triple_mlp_forward.1} parent=1 // pred_region
      // Predicated region
      $region58: #{_triple_mlp_forward.1} parent=56 // pred_check
        _
      $region59: #{_triple_mlp_forward.1} parent=56 // pred_check_branch
        %2730 = sbr.rel (0) target = $region61
      $region60: #{_triple_mlp_forward.1} parent=56 // pred_region
        // Predicated region
        $region62: #{_triple_mlp_forward.1} parent=60 // pred_check
          _
        $region63: #{_triple_mlp_forward.1} parent=60 // pred_check_branch
          %2732 = sbr.rel (0) target = $region65
        $region64: #{_triple_mlp_forward.1} parent=60 // pred_region
          // Predicated region
          $region77: #{_triple_mlp_forward.1} parent=64 // pred_check
            _
          $region78: #{_triple_mlp_forward.1} parent=64 // pred_check_branch
            %2747 = sbr.rel (0) target = $region80
          $region79: #{_triple_mlp_forward.1} parent=64 // pred_region
            loop: start=0, step=1, limit=1
            $region81: #{_triple_mlp_forward.1} parent=79 // loop_pre_header
              _
            $region82: #{_triple_mlp_forward.1} parent=79 // loop_header
              %s2749 = sphi 0, %s2753
              %p2750 = scmp.ge.s32.totalorder %s2749, 1
              %s2754 = sphi [#allocation12], [#allocation12]
              %s2755 = sphi %s7, %s7
            $region83: #{_triple_mlp_forward.1} parent=79 // loop_header_branch
              %2752 = sbr.rel (%p2750) target = $region87
            $region84: #{_triple_mlp_forward.1} parent=79 // loop_body
              %v2756 = vld [vmem:[%s2754] sm:$0xff]
              %2757 = vst [vmem:[%s2755] sm:$0xff] %v2756
            $region85: #{_triple_mlp_forward.1} parent=79 // loop_footer
              %s2753 = sadd.s32 1, %s2749
            $region86: #{_triple_mlp_forward.1} parent=79 // loop_footer_branch
              %2748 = sbr.rel target = $region82
            $region87: #{_triple_mlp_forward.1} parent=79 // loop_exit
              _
          $region80: #{_triple_mlp_forward.1} parent=64 // pred_fallthru
            _
          // Predicated region
          $region88: #{_triple_mlp_forward.1} parent=64 // pred_check
            _
          $region89: #{_triple_mlp_forward.1} parent=64 // pred_check_branch
            %2759 = sbr.rel target = $region91
          $region90: #{_triple_mlp_forward.1} parent=64 // pred_region
            _
          $region91: #{_triple_mlp_forward.1} parent=64 // pred_fallthru
            _
        $region65: #{_triple_mlp_forward.1} parent=60 // pred_fallthru
          _
        // Predicated region
        $region66: #{_triple_mlp_forward.1} parent=60 // pred_check
          _
        $region67: #{_triple_mlp_forward.1} parent=60 // pred_check_branch
          %2734 = sbr.rel target = $region69
        $region68: #{_triple_mlp_forward.1} parent=60 // pred_region
          loop: start=0, step=1, limit=1
          $region70: #{_triple_mlp_forward.1} parent=68 // loop_pre_header
            _
          $region71: #{_triple_mlp_forward.1} parent=68 // loop_header
            %s2737 = sphi 0, %s2741
            %p2738 = scmp.ge.s32.totalorder %s2737, 1
            %s2742 = sphi [#allocation12], [#allocation12]
            %s2743 = sphi %s7, %s7
          $region72: #{_triple_mlp_forward.1} parent=68 // loop_header_branch
            %2740 = sbr.rel (%p2738) target = $region76
          $region73: #{_triple_mlp_forward.1} parent=68 // loop_body
            %v2744 = vld [vmem:[%s2742] sm:$0xff]
            %2745 = vst [vmem:[%s2743] sm:$0xff] %v2744
          $region74: #{_triple_mlp_forward.1} parent=68 // loop_footer
            %s2741 = sadd.s32 1, %s2737
          $region75: #{_triple_mlp_forward.1} parent=68 // loop_footer_branch
            %2736 = sbr.rel target = $region71
          $region76: #{_triple_mlp_forward.1} parent=68 // loop_exit
            _
        $region69: #{_triple_mlp_forward.1} parent=60 // pred_fallthru
          _
      $region61: #{_triple_mlp_forward.1} parent=56 // pred_fallthru
        _
      %2760 = vnop
    $region57: #{_triple_mlp_forward.1} parent=1 // pred_fallthru
      _
    // Predicated region
    $region92: #{_triple_mlp_forward.1} parent=1 // pred_check
      _
    $region93: #{_triple_mlp_forward.1} parent=1 // pred_check_branch
      %2762 = sbr.rel (0) target = $region95
    $region94: #{_triple_mlp_forward.1} parent=1 // pred_region
      _
    $region95: #{_triple_mlp_forward.1} parent=1 // pred_fallthru
      _
    %2763 = vsyncpa [#allocation3], 1
    %2764 = vsyncpa [#allocation5], 1
    %2765 = vsyncpa [#allocation8], 1
    %2766 = vsyncpa [#allocation11], 1

</llo_original>
